<compile_context>
chip_gen: v7x
topology: tpu7x:2x2x1
jax: 0.10.0
libtpu: 0.0.40
codegen_flags: <defaults>
</compile_context>

<pallas_src>
import functools

import jax
import jax.numpy as jnp
from jax.experimental import pallas as pl
from jax.experimental.pallas import tpu as pltpu


def _g_spa_kernel(x_ref, w_ref, o_ref):
    # x_ref : (TB, H, C)   TB (batch, frame) slabs, channels-last
    # w_ref : (C, 2*D2)    [W1^T | W2^T] fused 1x1-conv weights
    # o_ref : (TB, H*H)    row-major flattened softmax(g1 @ g2^T) per slab
    TB, H, C = x_ref.shape
    D2 = w_ref.shape[1] // 2

    # Fused 1x1 convs: one big (TB*H, C) x (C, 2*D2) GEMM on the MXU.
    # H is a multiple of 8 here so the flatten is a pure layout no-op.
    # TODO(synk): for joint counts not a multiple of 8 (e.g. 25 in full SGN),
    # pad H up to a multiple of 8 in the wrapper before flattening.
    x = x_ref[...].reshape(TB * H, C)
    ab = jnp.dot(x, w_ref[...], preferred_element_type=jnp.float32)   # (TB*H, 2*D2)
    ab = ab.reshape(TB, H, 2 * D2)
    a = ab[:, :, :D2]                      # g1 projections  (TB, H, D2)
    b = ab[:, :, D2:]                      # g2 projections  (TB, H, D2)

    # Per-slab scores: s[t, h, k] = <a[t, h, :], b[t, k, :]>  (batched MXU matmul)
    s = jax.lax.dot_general(
        a, b,
        dimension_numbers=(((2,), (2,)), ((0,), (0,))),
        preferred_element_type=jnp.float32)                           # (TB, H, H)

    # Softmax over the last axis, all in f32.
    m = jnp.max(s, axis=-1, keepdims=True)
    e = jnp.exp(s - m)
    denom = jnp.sum(e, axis=-1, keepdims=True)
    p = (e * pl.reciprocal(denom, approx=True)).astype(o_ref.dtype)   # (TB, H, H)

    # Lane-dense packed store: out[:, h*H + k] = p[:, h, k].  Packing row-by-row
    # keeps the output block (and its HBM writeback) dense in the lane dimension
    # without relying on a minor-dim reshape inside the kernel.
    for h in range(H):
        o_ref[:, h * H:(h + 1) * H] = p[:, h, :]


def _choose_tb(total, H, C, in_itemsize,
               target_rows=2048, vmem_budget_bytes=20 * 1024 * 1024):
    """Pick TB slabs per grid step: divides `total`, ~target_rows GEMM rows,
    fits the VMEM budget (double-buffered in/out), multiple of 8 (sublane tile),
    and keeps >= 2 grid steps when possible (v7x has 2 TensorCores)."""
    per_slab = 2 * H * C * in_itemsize + 2 * H * H * 4   # dbl-buffered x + out
    cap = max(1, min(target_rows // max(H, 1), vmem_budget_bytes // per_slab))
    fallback = total
    for tb in range(min(cap, total), 0, -1):
        if total % tb:
            continue
        if not ((tb % 8 == 0) or (tb == total)):   # (8,128) tile rule on out block
            continue
        if total // tb >= 2 or total < 2:
            return tb
        fallback = tb
    return fallback


@functools.partial(jax.jit, static_argnames=("mxu_dtype",))
def compute_g_spa(x, w1, w2, *, mxu_dtype=None):
    """x: (N, C, H, W) f32; w1, w2: (D2, C) 1x1-conv weights (no bias).

    mxu_dtype: optional MXU input dtype (e.g. jnp.bfloat16 on v6e/v7x);
    accumulation and softmax stay in f32.
    """
    N, C, H, W = x.shape
    D2 = w1.shape[0]
    NW = N * W

    # Glue: NCHW -> (N*W, H, C) channels-last slabs; fused weights -> (C, 2*D2).
    # TODO(synk): this transpose is a separate HBM pass; it could be removed by
    # consuming NCHW directly (contract C inside the kernel) or hinted away with
    # CompilerParams(allow_input_fusion=...).
    x_t = jnp.transpose(x, (0, 3, 2, 1)).reshape(NW, H, C)
    w_cat = jnp.concatenate([w1.T, w2.T], axis=1)           # (C, 2*D2)

    if mxu_dtype is not None:
        x_t = x_t.astype(mxu_dtype)
        w_cat = w_cat.astype(mxu_dtype)

    tb = _choose_tb(NW, H, C, jnp.dtype(x_t.dtype).itemsize)
    grid = (NW // tb,)

    out = pl.pallas_call(
        _g_spa_kernel,
        out_shape=jax.ShapeDtypeStruct((NW, H * H), jnp.float32),
        grid_spec=pltpu.PrefetchScalarGridSpec(
            num_scalar_prefetch=0,
            grid=grid,
            in_specs=[
                pl.BlockSpec((tb, H, C), lambda i: (i, 0, 0)),
                # Constant index_map: the fused weight block is revisited every
                # step, so it is only DMA'd once.  (pipeline_mode=pl.Buffered(1)
                # could additionally drop its second VMEM buffer.)
                pl.BlockSpec((C, 2 * D2), lambda i: (0, 0)),
            ],
            out_specs=pl.BlockSpec((tb, H * H), lambda i: (i, 0)),
        ),
        compiler_params=pltpu.CompilerParams(
            dimension_semantics=("parallel",),
            vmem_limit_bytes=32 * 1024 * 1024,   # raise v5e's 16 MiB default
        ),
    )(x_t, w_cat)

    return out.reshape(N, W, H, H)


def _reference(x, w1, w2):
    # Pure-JAX reference mirroring the PyTorch module.
    g1 = jnp.einsum('nchw,dc->ndhw', x, w1)                 # 1x1 conv, no bias
    g2 = jnp.einsum('nchw,dc->ndhw', x, w2)
    g1 = jnp.transpose(g1, (0, 3, 2, 1))                    # (N, W, H, D2)
    g2 = jnp.transpose(g2, (0, 3, 1, 2))                    # (N, W, D2, H)
    g3 = jnp.einsum('nwhd,nwdk->nwhk', g1, g2)              # (N, W, H, H)
    return jax.nn.softmax(g3, axis=-1)


if __name__ == "__main__":
    # Small shapes consistent with the module (dim1 == dim2 for compute_g_spa).
    N, C, H, W = 2, 32, 16, 8     # batch, channels(dim1), joints, frames
    D2 = 32                       # dim2

    key = jax.random.PRNGKey(0)
    kx, k1, k2 = jax.random.split(key, 3)
    x = jax.random.normal(kx, (N, C, H, W), dtype=jnp.float32)
    # Deterministic Conv2d(1x1, bias=False) weights: (out_ch, in_ch)
    w1 = jax.random.normal(k1, (D2, C), dtype=jnp.float32) * (1.0 / C) ** 0.5
    w2 = jax.random.normal(k2, (D2, C), dtype=jnp.float32) * (1.0 / C) ** 0.5

    # Default f32 path.
    g = jax.block_until_ready(compute_g_spa(x, w1, w2))
    ref = _reference(x, w1, w2)
    assert g.shape == (N, W, H, H)
    # Tolerance leaves headroom for the EUP approximate reciprocal in softmax.
    assert jnp.allclose(g, ref, atol=2e-3, rtol=2e-3)

    # bf16 MXU-input path (v6e/v7x feedback): compare against the reference fed
    # the same bf16-rounded inputs (accumulation stays f32 on both sides).
    g_bf16 = jax.block_until_ready(compute_g_spa(x, w1, w2, mxu_dtype=jnp.bfloat16))
    xr = x.astype(jnp.bfloat16).astype(jnp.float32)
    w1r = w1.astype(jnp.bfloat16).astype(jnp.float32)
    w2r = w2.astype(jnp.bfloat16).astype(jnp.float32)
    ref_bf16 = _reference(xr, w1r, w2r)
    assert g_bf16.shape == (N, W, H, H)
    assert jnp.allclose(g_bf16, ref_bf16, atol=2e-2, rtol=2e-2)

    print("KERNEL_OK")
</pallas_src>

<mosaic_0001>
module attributes {stable_mosaic.version = 11 : i64} {
  func.func @_g_spa_kernel(%arg0: i32, %arg1: memref<8x16x32xf32, #tpu.memory_space<vmem>>, %arg2: memref<32x64xf32, #tpu.memory_space<vmem>>, %arg3: memref<8x256xf32, #tpu.memory_space<vmem>>) attributes {dimension_semantics = [#tpu.dimension_semantics<parallel>], iteration_bounds = array<i64: 2>, scalar_prefetch = 0 : i64, scratch_operands = 0 : i64, tpu.core_type = #tpu.core_type<tc>, window_params = [{transform_indices = @transform_0, window_bounds = array<i64: 8, 16, 32>}, {pipeline_mode = #tpu.pipeline_mode<synchronous>, transform_indices = @transform_1, window_bounds = array<i64: 32, 64>}, {transform_indices = @transform_2, window_bounds = array<i64: 8, 256>}]} {
    %c0 = arith.constant 0 : index
    %c0_0 = arith.constant 0 : index
    %c0_1 = arith.constant 0 : index
    %0 = vector.load %arg1[%c0, %c0_0, %c0_1] : memref<8x16x32xf32, #tpu.memory_space<vmem>>, vector<8x16x32xf32>
    %1 = vector.shape_cast %0 : vector<8x16x32xf32> to vector<128x32xf32>
    %c0_2 = arith.constant 0 : index
    %c0_3 = arith.constant 0 : index
    %2 = vector.load %arg2[%c0_2, %c0_3] : memref<32x64xf32, #tpu.memory_space<vmem>>, vector<32x64xf32>
    %cst = arith.constant dense<0.000000e+00> : vector<128x64xf32>
    %3 = tpu.matmul %1, %2, %cst {dimension_numbers = #tpu.dot_dimension_numbers<[1], [0], [0], [1], [0, 0, 1, 1], [], []>} : vector<128x32xf32>, vector<32x64xf32>, vector<128x64xf32> -> vector<128x64xf32>
    %4 = vector.shape_cast %3 : vector<128x64xf32> to vector<8x16x64xf32>
    %5 = vector.extract_strided_slice %4 {offsets = [0, 0, 0], sizes = [8, 16, 32], strides = [1, 1, 1]} : vector<8x16x64xf32> to vector<8x16x32xf32>
    %6 = vector.extract_strided_slice %4 {offsets = [0, 0, 32], sizes = [8, 16, 32], strides = [1, 1, 1]} : vector<8x16x64xf32> to vector<8x16x32xf32>
    %cst_4 = arith.constant dense<0.000000e+00> : vector<8x16x16xf32>
    %7 = tpu.matmul %5, %6, %cst_4 {dimension_numbers = #tpu.dot_dimension_numbers<[2], [2], [1], [1], [0, 0, 0, 1, 1, 1], [0], [0]>} : vector<8x16x32xf32>, vector<8x16x32xf32>, vector<8x16x16xf32> -> vector<8x16x16xf32>
    %cst_5 = arith.constant dense<0xFF800000> : vector<8x16xf32>
    %8 = vector.multi_reduction <maximumf>, %7, %cst_5 [2] : vector<8x16x16xf32> to vector<8x16xf32>
    %9 = vector.shape_cast %8 : vector<8x16xf32> to vector<8x16x1xf32>
    %10 = vector.broadcast %9 : vector<8x16x1xf32> to vector<8x16x16xf32>
    %11 = arith.subf %7, %10 : vector<8x16x16xf32>
    %12 = math.exp %11 : vector<8x16x16xf32>
    %cst_6 = arith.constant dense<0.000000e+00> : vector<8x16xf32>
    %13 = vector.multi_reduction <add>, %12, %cst_6 [2] : vector<8x16x16xf32> to vector<8x16xf32>
    %14 = vector.shape_cast %13 : vector<8x16xf32> to vector<8x16x1xf32>
    %15 = tpu.reciprocal %14 {approx = true} : vector<8x16x1xf32> -> vector<8x16x1xf32>
    %16 = vector.broadcast %15 : vector<8x16x1xf32> to vector<8x16x16xf32>
    %17 = arith.mulf %12, %16 : vector<8x16x16xf32>
    %18 = vector.extract_strided_slice %17 {offsets = [0, 0, 0], sizes = [8, 1, 16], strides = [1, 1, 1]} : vector<8x16x16xf32> to vector<8x1x16xf32>
    %19 = vector.shape_cast %18 : vector<8x1x16xf32> to vector<8x16xf32>
    %c0_7 = arith.constant 0 : index
    %c0_8 = arith.constant 0 : index
    %20 = vector.load %arg3[%c0_7, %c0_8] : memref<8x256xf32, #tpu.memory_space<vmem>>, vector<8x16xf32>
    tpu.vector_store %arg3[%c0_7, %c0_8], %19 {strides = array<i32>} : memref<8x256xf32, #tpu.memory_space<vmem>>, vector<8x16xf32>,
    %21 = vector.extract_strided_slice %17 {offsets = [0, 1, 0], sizes = [8, 1, 16], strides = [1, 1, 1]} : vector<8x16x16xf32> to vector<8x1x16xf32>
    %22 = vector.shape_cast %21 : vector<8x1x16xf32> to vector<8x16xf32>
    %c0_9 = arith.constant 0 : index
    %c16 = arith.constant 16 : index
    %23 = vector.load %arg3[%c0_9, %c16] : memref<8x256xf32, #tpu.memory_space<vmem>>, vector<8x16xf32>
    tpu.vector_store %arg3[%c0_9, %c16], %22 {strides = array<i32>} : memref<8x256xf32, #tpu.memory_space<vmem>>, vector<8x16xf32>,
    %24 = vector.extract_strided_slice %17 {offsets = [0, 2, 0], sizes = [8, 1, 16], strides = [1, 1, 1]} : vector<8x16x16xf32> to vector<8x1x16xf32>
    %25 = vector.shape_cast %24 : vector<8x1x16xf32> to vector<8x16xf32>
    %c0_10 = arith.constant 0 : index
    %c32 = arith.constant 32 : index
    %26 = vector.load %arg3[%c0_10, %c32] : memref<8x256xf32, #tpu.memory_space<vmem>>, vector<8x16xf32>
    tpu.vector_store %arg3[%c0_10, %c32], %25 {strides = array<i32>} : memref<8x256xf32, #tpu.memory_space<vmem>>, vector<8x16xf32>,
    %27 = vector.extract_strided_slice %17 {offsets = [0, 3, 0], sizes = [8, 1, 16], strides = [1, 1, 1]} : vector<8x16x16xf32> to vector<8x1x16xf32>
    %28 = vector.shape_cast %27 : vector<8x1x16xf32> to vector<8x16xf32>
    %c0_11 = arith.constant 0 : index
    %c48 = arith.constant 48 : index
    %29 = vector.load %arg3[%c0_11, %c48] : memref<8x256xf32, #tpu.memory_space<vmem>>, vector<8x16xf32>
    tpu.vector_store %arg3[%c0_11, %c48], %28 {strides = array<i32>} : memref<8x256xf32, #tpu.memory_space<vmem>>, vector<8x16xf32>,
    %30 = vector.extract_strided_slice %17 {offsets = [0, 4, 0], sizes = [8, 1, 16], strides = [1, 1, 1]} : vector<8x16x16xf32> to vector<8x1x16xf32>
    %31 = vector.shape_cast %30 : vector<8x1x16xf32> to vector<8x16xf32>
    %c0_12 = arith.constant 0 : index
    %c64 = arith.constant 64 : index
    %32 = vector.load %arg3[%c0_12, %c64] : memref<8x256xf32, #tpu.memory_space<vmem>>, vector<8x16xf32>
    tpu.vector_store %arg3[%c0_12, %c64], %31 {strides = array<i32>} : memref<8x256xf32, #tpu.memory_space<vmem>>, vector<8x16xf32>,
    %33 = vector.extract_strided_slice %17 {offsets = [0, 5, 0], sizes = [8, 1, 16], strides = [1, 1, 1]} : vector<8x16x16xf32> to vector<8x1x16xf32>
    %34 = vector.shape_cast %33 : vector<8x1x16xf32> to vector<8x16xf32>
    %c0_13 = arith.constant 0 : index
    %c80 = arith.constant 80 : index
    %35 = vector.load %arg3[%c0_13, %c80] : memref<8x256xf32, #tpu.memory_space<vmem>>, vector<8x16xf32>
    tpu.vector_store %arg3[%c0_13, %c80], %34 {strides = array<i32>} : memref<8x256xf32, #tpu.memory_space<vmem>>, vector<8x16xf32>,
    %36 = vector.extract_strided_slice %17 {offsets = [0, 6, 0], sizes = [8, 1, 16], strides = [1, 1, 1]} : vector<8x16x16xf32> to vector<8x1x16xf32>
    %37 = vector.shape_cast %36 : vector<8x1x16xf32> to vector<8x16xf32>
    %c0_14 = arith.constant 0 : index
    %c96 = arith.constant 96 : index
    %38 = vector.load %arg3[%c0_14, %c96] : memref<8x256xf32, #tpu.memory_space<vmem>>, vector<8x16xf32>
    tpu.vector_store %arg3[%c0_14, %c96], %37 {strides = array<i32>} : memref<8x256xf32, #tpu.memory_space<vmem>>, vector<8x16xf32>,
    %39 = vector.extract_strided_slice %17 {offsets = [0, 7, 0], sizes = [8, 1, 16], strides = [1, 1, 1]} : vector<8x16x16xf32> to vector<8x1x16xf32>
    %40 = vector.shape_cast %39 : vector<8x1x16xf32> to vector<8x16xf32>
    %c0_15 = arith.constant 0 : index
    %c112 = arith.constant 112 : index
    %41 = vector.load %arg3[%c0_15, %c112] : memref<8x256xf32, #tpu.memory_space<vmem>>, vector<8x16xf32>
    tpu.vector_store %arg3[%c0_15, %c112], %40 {strides = array<i32>} : memref<8x256xf32, #tpu.memory_space<vmem>>, vector<8x16xf32>,
    %42 = vector.extract_strided_slice %17 {offsets = [0, 8, 0], sizes = [8, 1, 16], strides = [1, 1, 1]} : vector<8x16x16xf32> to vector<8x1x16xf32>
    %43 = vector.shape_cast %42 : vector<8x1x16xf32> to vector<8x16xf32>
    %c0_16 = arith.constant 0 : index
    %c128 = arith.constant 128 : index
    %44 = vector.load %arg3[%c0_16, %c128] : memref<8x256xf32, #tpu.memory_space<vmem>>, vector<8x16xf32>
    tpu.vector_store %arg3[%c0_16, %c128], %43 {strides = array<i32>} : memref<8x256xf32, #tpu.memory_space<vmem>>, vector<8x16xf32>,
    %45 = vector.extract_strided_slice %17 {offsets = [0, 9, 0], sizes = [8, 1, 16], strides = [1, 1, 1]} : vector<8x16x16xf32> to vector<8x1x16xf32>
    %46 = vector.shape_cast %45 : vector<8x1x16xf32> to vector<8x16xf32>
    %c0_17 = arith.constant 0 : index
    %c144 = arith.constant 144 : index
    %47 = vector.load %arg3[%c0_17, %c144] : memref<8x256xf32, #tpu.memory_space<vmem>>, vector<8x16xf32>
    tpu.vector_store %arg3[%c0_17, %c144], %46 {strides = array<i32>} : memref<8x256xf32, #tpu.memory_space<vmem>>, vector<8x16xf32>,
    %48 = vector.extract_strided_slice %17 {offsets = [0, 10, 0], sizes = [8, 1, 16], strides = [1, 1, 1]} : vector<8x16x16xf32> to vector<8x1x16xf32>
    %49 = vector.shape_cast %48 : vector<8x1x16xf32> to vector<8x16xf32>
    %c0_18 = arith.constant 0 : index
    %c160 = arith.constant 160 : index
    %50 = vector.load %arg3[%c0_18, %c160] : memref<8x256xf32, #tpu.memory_space<vmem>>, vector<8x16xf32>
    tpu.vector_store %arg3[%c0_18, %c160], %49 {strides = array<i32>} : memref<8x256xf32, #tpu.memory_space<vmem>>, vector<8x16xf32>,
    %51 = vector.extract_strided_slice %17 {offsets = [0, 11, 0], sizes = [8, 1, 16], strides = [1, 1, 1]} : vector<8x16x16xf32> to vector<8x1x16xf32>
    %52 = vector.shape_cast %51 : vector<8x1x16xf32> to vector<8x16xf32>
    %c0_19 = arith.constant 0 : index
    %c176 = arith.constant 176 : index
    %53 = vector.load %arg3[%c0_19, %c176] : memref<8x256xf32, #tpu.memory_space<vmem>>, vector<8x16xf32>
    tpu.vector_store %arg3[%c0_19, %c176], %52 {strides = array<i32>} : memref<8x256xf32, #tpu.memory_space<vmem>>, vector<8x16xf32>,
    %54 = vector.extract_strided_slice %17 {offsets = [0, 12, 0], sizes = [8, 1, 16], strides = [1, 1, 1]} : vector<8x16x16xf32> to vector<8x1x16xf32>
    %55 = vector.shape_cast %54 : vector<8x1x16xf32> to vector<8x16xf32>
    %c0_20 = arith.constant 0 : index
    %c192 = arith.constant 192 : index
    %56 = vector.load %arg3[%c0_20, %c192] : memref<8x256xf32, #tpu.memory_space<vmem>>, vector<8x16xf32>
    tpu.vector_store %arg3[%c0_20, %c192], %55 {strides = array<i32>} : memref<8x256xf32, #tpu.memory_space<vmem>>, vector<8x16xf32>,
    %57 = vector.extract_strided_slice %17 {offsets = [0, 13, 0], sizes = [8, 1, 16], strides = [1, 1, 1]} : vector<8x16x16xf32> to vector<8x1x16xf32>
    %58 = vector.shape_cast %57 : vector<8x1x16xf32> to vector<8x16xf32>
    %c0_21 = arith.constant 0 : index
    %c208 = arith.constant 208 : index
    %59 = vector.load %arg3[%c0_21, %c208] : memref<8x256xf32, #tpu.memory_space<vmem>>, vector<8x16xf32>
    tpu.vector_store %arg3[%c0_21, %c208], %58 {strides = array<i32>} : memref<8x256xf32, #tpu.memory_space<vmem>>, vector<8x16xf32>,
    %60 = vector.extract_strided_slice %17 {offsets = [0, 14, 0], sizes = [8, 1, 16], strides = [1, 1, 1]} : vector<8x16x16xf32> to vector<8x1x16xf32>
    %61 = vector.shape_cast %60 : vector<8x1x16xf32> to vector<8x16xf32>
    %c0_22 = arith.constant 0 : index
    %c224 = arith.constant 224 : index
    %62 = vector.load %arg3[%c0_22, %c224] : memref<8x256xf32, #tpu.memory_space<vmem>>, vector<8x16xf32>
    tpu.vector_store %arg3[%c0_22, %c224], %61 {strides = array<i32>} : memref<8x256xf32, #tpu.memory_space<vmem>>, vector<8x16xf32>,
    %63 = vector.extract_strided_slice %17 {offsets = [0, 15, 0], sizes = [8, 1, 16], strides = [1, 1, 1]} : vector<8x16x16xf32> to vector<8x1x16xf32>
    %64 = vector.shape_cast %63 : vector<8x1x16xf32> to vector<8x16xf32>
    %c0_23 = arith.constant 0 : index
    %c240 = arith.constant 240 : index
    %65 = vector.load %arg3[%c0_23, %c240] : memref<8x256xf32, #tpu.memory_space<vmem>>, vector<8x16xf32>
    tpu.vector_store %arg3[%c0_23, %c240], %64 {strides = array<i32>} : memref<8x256xf32, #tpu.memory_space<vmem>>, vector<8x16xf32>,
    return
  }
  func.func @transform_0(%arg0: i32) -> (i32, i32, i32) {
    %c0_i32 = arith.constant 0 : i32
    %c0_i32_0 = arith.constant 0 : i32
    %c0_i32_1 = arith.constant 0 : i32
    return %arg0, %c0_i32, %c0_i32_0 : i32, i32, i32
  }
  func.func @transform_1(%arg0: i32) -> (i32, i32) {
    %c0_i32 = arith.constant 0 : i32
    %c0_i32_0 = arith.constant 0 : i32
    %c0_i32_1 = arith.constant 0 : i32
    return %c0_i32, %c0_i32_0 : i32, i32
  }
  func.func @transform_2(%arg0: i32) -> (i32, i32) {
    %c0_i32 = arith.constant 0 : i32
    %c0_i32_0 = arith.constant 0 : i32
    return %arg0, %c0_i32 : i32, i32
  }
}

</mosaic_0001>

<llo_original>
// kernel: compute_g_spa.1
$region0: #{compute_g_spa.1}
  #allocation0 [shape = 'u32[]', space=smem, size = 0x4, offset = 0x4, fixed_abs, tag = 'smem constant byte address 0x4 - core index']
  #allocation1 [shape = 'u32[144,128]{1,0:T(1,128)}', space=vmem, size = 0x12000, scoped, tag = 'internal scratch']
  %s0 = inlined_call_operand.vmem [shape: f32[16,16,32], index: 0, kind: input, shape index: {}]
  %s1 = inlined_call_operand.vmem [shape: f32[32,64], index: 1, kind: input, shape index: {}]
  %s2 = inlined_call_operand.vmem [shape: f32[16,256], index: 2, kind: output, shape index: {}]
  %s3 = sld [smem:[#allocation0]]
  $region41: #{compute_g_spa.1} parent=0
    _
  %s5 = ssub.s32 1, %s3
  %s6 = scalar_select 0, %s5, %s3
  loop: start=0, step=1, limit=4
  $region2: #{compute_g_spa.1} parent=0 // loop_pre_header
    _
  $region3: #{compute_g_spa.1} parent=0 // loop_header
    %s8 = sphi 0, %s12
    %p9 = scmp.ge.s32.totalorder %s8, 4
    %s18 = sphi 0, %s20
    %s21 = sphi 0, %s18
    %s22 = sphi 0, %s21
    %s38 = sphi 0, %s22
    %s42 = sphi 0, %s42
    %s44 = sphi 0, %s42
    %s45 = sphi 0, %s44
    %s59 = sphi 0, %s45
    %s65 = sphi 0, %s67
    %s68 = sphi 0, %s65
    %s69 = sphi 0, %s68
    %s85 = sphi 0, %s69
  $region4: #{compute_g_spa.1} parent=0 // loop_header_branch
    %11 = sbr.rel (%p9) target = $region8
  $region5: #{compute_g_spa.1} parent=0 // loop_body
    %s13 = ssub.s32 %s8, 1
    %s14 = ssub.s32 %s8, 2
    %s15 = sadd.s32 %s8, 1
    %s16 = ssub.s32 %s8, %s15
    %p17 = scmp.eq.s32.totalorder %s16, 0
    %s19 = sadd.s32 %s18, 1
    %s20 = scalar_select %p17, %s18, %s19
    %p23 = pneg %p17
    %p24 = scmp.eq.s32.totalorder %s8, 1
    %p25 = por %p23, %p24
    %p26 = scmp.ne.s32.totalorder %s18, %s21
    %p27 = scmp.eq.s32.totalorder %s8, 0
    %p28 = por %p26, %p27
    %p29 = scmp.ne.s32.totalorder %s18, %s21
    %p30 = scmp.eq.s32.totalorder %s13, 1
    %p31 = por %p29, %p30
    %p32 = scmp.ne.s32.totalorder %s21, %s22
    %p33 = scmp.eq.s32.totalorder %s13, 0
    %p34 = por %p32, %p33
    %p35 = scmp.ne.s32.totalorder %s21, %s22
    %p36 = scmp.eq.s32.totalorder %s14, 1
    %p37 = por %p35, %p36
    %p39 = scmp.ne.s32.totalorder %s22, %s38
    %p40 = scmp.eq.s32.totalorder %s14, 0
    %p41 = por %p39, %p40
    %s43 = sadd.s32 %s42, 1
    %p46 = scmp.eq.s32.totalorder %s8, 1
    %p47 = scmp.ne.s32.totalorder %s42, %s44
    %p48 = scmp.eq.s32.totalorder %s8, 0
    %p49 = por %p47, %p48
    %p50 = scmp.ne.s32.totalorder %s42, %s44
    %p51 = scmp.eq.s32.totalorder %s13, 1
    %p52 = por %p50, %p51
    %p53 = scmp.ne.s32.totalorder %s44, %s45
    %p54 = scmp.eq.s32.totalorder %s13, 0
    %p55 = por %p53, %p54
    %p56 = scmp.ne.s32.totalorder %s44, %s45
    %p57 = scmp.eq.s32.totalorder %s14, 1
    %p58 = por %p56, %p57
    %p60 = scmp.ne.s32.totalorder %s45, %s59
    %p61 = scmp.eq.s32.totalorder %s14, 0
    %p62 = por %p60, %p61
    %s63 = ssub.s32 %s8, %s15
    %p64 = scmp.eq.s32.totalorder %s63, 0
    %s66 = sadd.s32 %s65, 1
    %s67 = scalar_select %p64, %s65, %s66
    %p70 = pneg %p64
    %p71 = scmp.eq.s32.totalorder %s8, 1
    %p72 = por %p70, %p71
    %p73 = scmp.ne.s32.totalorder %s65, %s68
    %p74 = scmp.eq.s32.totalorder %s8, 0
    %p75 = por %p73, %p74
    %p76 = scmp.ne.s32.totalorder %s65, %s68
    %p77 = scmp.eq.s32.totalorder %s13, 1
    %p78 = por %p76, %p77
    %p79 = scmp.ne.s32.totalorder %s68, %s69
    %p80 = scmp.eq.s32.totalorder %s13, 0
    %p81 = por %p79, %p80
    %p82 = scmp.ne.s32.totalorder %s68, %s69
    %p83 = scmp.eq.s32.totalorder %s14, 1
    %p84 = por %p82, %p83
    %p86 = scmp.ne.s32.totalorder %s69, %s85
    %p87 = scmp.eq.s32.totalorder %s14, 0
    %p88 = por %p86, %p87
    %p89 = scmp.le.s32.totalorder 1, %s8
    %p90 = scmp.lt.s32.totalorder %s8, 3
    %p91 = pnand %p89, %p90
    %p92 = pneg %p91
    // Predicated region
    $region9: #{compute_g_spa.1} parent=5 // pred_check
      _
    $region10: #{compute_g_spa.1} parent=5 // pred_check_branch
      %94 = sbr.rel (%p91) target = $region12
    $region11: #{compute_g_spa.1} parent=5 // pred_region
      %s95 = ssub.s32 %s8, 1
      // Predicated region
      $region13: #{compute_g_spa.1} parent=11 // pred_check
        %p96 = pneg %p55
      $region14: #{compute_g_spa.1} parent=11 // pred_check_branch
        %98 = sbr.rel (%p96) target = $region16
      $region15: #{compute_g_spa.1} parent=11 // pred_region
        _
      $region16: #{compute_g_spa.1} parent=11 // pred_fallthru
        _
    $region12: #{compute_g_spa.1} parent=5 // pred_fallthru
      _
    %p99 = scmp.lt.s32.totalorder %s8, 2
    // Predicated region
    $region17: #{compute_g_spa.1} parent=5 // pred_check
      %p100 = pneg %p99
    $region18: #{compute_g_spa.1} parent=5 // pred_check_branch
      %102 = sbr.rel (%p100) target = $region20
    $region19: #{compute_g_spa.1} parent=5 // pred_region
      // Predicated region
      $region21: #{compute_g_spa.1} parent=19 // pred_check
        %p103 = pneg %p28
      $region22: #{compute_g_spa.1} parent=19 // pred_check_branch
        %105 = sbr.rel (%p103) target = $region24
      $region23: #{compute_g_spa.1} parent=19 // pred_region
        %s106 = smul.u32 8, %s8
        %p107 = scmp.lt.s32.totalorder %s106, 15
        %s108 = scalar_select %p107, %s106, 15
        %s109 = smul.addr %s108, 2
        %s110 = smul.addr %s109, 8
        %s111 = scalar_lea.vmem %s0, %s110
        %s112 = smul.u32 8, %s8
      $region24: #{compute_g_spa.1} parent=19 // pred_fallthru
        _
    $region20: #{compute_g_spa.1} parent=5 // pred_fallthru
      _
    %p113 = scmp.le.s32.totalorder 1, %s8
    %p114 = scmp.lt.s32.totalorder %s8, 3
    %p115 = pnand %p113, %p114
    %p116 = pneg %p115
    // Predicated region
    $region25: #{compute_g_spa.1} parent=5 // pred_check
      _
    $region26: #{compute_g_spa.1} parent=5 // pred_check_branch
      %118 = sbr.rel (%p115) target = $region28
    $region27: #{compute_g_spa.1} parent=5 // pred_region
      %s119 = ssub.s32 %s8, 1
      %s120 = smul.u32 8, %s13
      %p121 = scmp.lt.s32.totalorder %s120, 15
      %s122 = scalar_select %p121, %s120, 15
      %s123 = smul.addr %s122, 2
      %s124 = smul.addr %s123, 8
      %s125 = scalar_lea.vmem %s0, %s124
      %p126 = pneg %p34
      %p127 = pneg %p31
      %p128 = pneg %p55
      %p129 = pneg %p52
      %p130 = pneg %p81
      %p131 = pneg %p78
      %p132 = scmp.lt.s32.totalorder %s13, 1
      %s133 = scalar_select %p132, %s13, 1
      %s134 = smul.addr %s133, 2
      %s135 = smul.addr %s134, 8
      %s136 = scalar_lea.vmem %s2, %s135
      %s137 = smul.u32 8, %s13
      %p138 = scmp.lt.s32.totalorder %s137, 15
      %s139 = scalar_select %p138, %s137, 15
      %s140 = smul.addr %s139, 2
      %s141 = smul.addr %s140, 8
      %s142 = scalar_lea.vmem %s0, %s141
      %s143 = smul.u32 8, %s13
      %p144 = scmp.lt.s32.totalorder %s13, 1
      %s145 = scalar_select %p144, %s13, 1
      %s146 = smul.addr %s145, 2
      %s147 = smul.addr %s146, 8
      %s148 = scalar_lea.vmem %s2, %s147
      %v149 = vld [vmem:[%s142] sm:$0xff]
      %v150 = vld [vmem:[%s142 + $0x8] sm:$0xff]
      %v151 = vld [vmem:[%s142 + $0x10] sm:$0xff]
      %v152 = vld [vmem:[%s142 + $0x18] sm:$0xff]
      %v153 = vld [vmem:[%s142 + $0x20] sm:$0xff]
      %v154 = vld [vmem:[%s142 + $0x28] sm:$0xff]
      %v155 = vld [vmem:[%s142 + $0x30] sm:$0xff]
      %v156 = vld [vmem:[%s142 + $0x38] sm:$0xff]
      %v157 = vld [vmem:[%s142 + $0x40] sm:$0xff]
      %v158 = vld [vmem:[%s142 + $0x48] sm:$0xff]
      %v159 = vld [vmem:[%s142 + $0x50] sm:$0xff]
      %v160 = vld [vmem:[%s142 + $0x58] sm:$0xff]
      %v161 = vld [vmem:[%s142 + $0x60] sm:$0xff]
      %v162 = vld [vmem:[%s142 + $0x68] sm:$0xff]
      %v163 = vld [vmem:[%s142 + $0x70] sm:$0xff]
      %v164 = vld [vmem:[%s142 + $0x78] sm:$0xff]
      %v165 = vld [vmem:[%s1] sm:$0xff]
      %v166 = vld [vmem:[%s1 + $0x8] sm:$0xff]
      %v167 = vld [vmem:[%s1 + $0x10] sm:$0xff]
      %v168 = vld [vmem:[%s1 + $0x18] sm:$0xff]
      %vm169 = vcmask 261120
      %v171 = vsel %vm169, %v149, 0
      %v174 = vsel %vm169, %v150, 0
      %v177 = vsel %vm169, %v151, 0
      %v180 = vsel %vm169, %v152, 0
      %v183 = vsel %vm169, %v153, 0
      %v186 = vsel %vm169, %v154, 0
      %v189 = vsel %vm169, %v155, 0
      %v192 = vsel %vm169, %v156, 0
      %v195 = vsel %vm169, %v157, 0
      %v198 = vsel %vm169, %v158, 0
      %v201 = vsel %vm169, %v159, 0
      %v204 = vsel %vm169, %v160, 0
      %v207 = vsel %vm169, %v161, 0
      %v210 = vsel %vm169, %v162, 0
      %v213 = vsel %vm169, %v163, 0
      %v216 = vsel %vm169, %v164, 0
      %218 = vmatprep.subr.mxu0 0.0
      %219 = vmatpush1.msra.mxu0 %v165
      %220 = vmatprep.subr.mxu0 0.0
      %221 = vmatpush1.msra.mxu0 %v166
      %222 = vmatprep.subr.mxu0 0.0
      %223 = vmatpush1.msra.mxu0 %v167
      %224 = vmatprep.subr.mxu0 0.0
      %225 = vmatpush1.msra.mxu0 %v168
      %226 = vmatprep.subr.mxu0 0.0
      %227 = vmatpush1.msra.mxu0 0.0
      %228 = vmatprep.subr.mxu0 0.0
      %229 = vmatpush1.msra.mxu0 0.0
      %230 = vmatprep.subr.mxu0 0.0
      %231 = vmatpush1.msra.mxu0 0.0
      %232 = vmatprep.subr.mxu0 0.0
      %233 = vmatpush1.msra.mxu0 0.0
      %234 = vmatprep.subr.mxu0 0.0
      %235 = vmatpush1.msra.mxu0 0.0
      %236 = vmatprep.subr.mxu0 0.0
      %237 = vmatpush1.msra.mxu0 0.0
      %238 = vmatprep.subr.mxu0 0.0
      %239 = vmatpush1.msra.mxu0 0.0
      %240 = vmatprep.subr.mxu0 0.0
      %241 = vmatpush1.msra.mxu0 0.0
      %242 = vmatprep.subr.mxu0 0.0
      %243 = vmatpush1.msra.mxu0 0.0
      %244 = vmatprep.subr.mxu0 0.0
      %245 = vmatpush1.msra.mxu0 0.0
      %246 = vmatprep.subr.mxu0 0.0
      %247 = vmatpush1.msra.mxu0 0.0
      %248 = vmatprep.subr.mxu0 0.0
      %249 = vmatpush1.msra.mxu0 0.0
      %250 = vmatprep.subr.mxu0 0.0
      %251 = vmatpush1.msra.mxu0 0.0
      %252 = vmatprep.subr.mxu0 0.0
      %253 = vmatpush1.msra.mxu0 0.0
      %254 = vmatprep.subr.mxu0 0.0
      %255 = vmatpush1.msra.mxu0 0.0
      %256 = vmatprep.subr.mxu0 0.0
      %257 = vmatpush1.msra.mxu0 0.0
      %258 = vmatprep.subr.mxu0 0.0
      %259 = vmatpush1.msra.mxu0 0.0
      %260 = vmatprep.subr.mxu0 0.0
      %261 = vmatpush1.msra.mxu0 0.0
      %262 = vmatprep.subr.mxu0 0.0
      %263 = vmatpush1.msra.mxu0 0.0
      %264 = vmatprep.subr.mxu0 0.0
      %265 = vmatpush1.msra.mxu0 0.0
      %266 = vmatprep.subr.mxu0 0.0
      %267 = vmatpush1.msra.mxu0 0.0
      %268 = vmatprep.subr.mxu0 0.0
      %269 = vmatpush1.msra.mxu0 0.0
      %270 = vmatprep.subr.mxu0 0.0
      %271 = vmatpush1.msra.mxu0 0.0
      %272 = vmatprep.subr.mxu0 0.0
      %273 = vmatpush1.msra.mxu0 0.0
      %274 = vmatprep.subr.mxu0 0.0
      %275 = vmatpush1.msra.mxu0 0.0
      %276 = vmatprep.subr.mxu0 0.0
      %277 = vmatpush1.msra.mxu0 0.0
      %278 = vmatprep.subr.mxu0 0.0
      %279 = vmatpush1.msra.mxu0 0.0
      %280 = vmatprep.subr.mxu0 0.0
      %281 = vmatpush1.msra.mxu0 0.0
      %282 = vmatprep.mubr.f32.mxu0 0.0
      %283 = vmatmul.mubr.f32.gmra.mrb[0].mxu0 %v171
      %v284 = vpop.f32.mrb[0].mxu0
      %v285 = vadd.f32 0.0, %v284
      %v286 = vpop.f32.mrb[0].mxu0
      %287 = vmatprep.mubr.f32.mxu0 0.0
      %288 = vmatmul.mubr.f32.gmra.mrb[0].mxu0 %v174
      %v289 = vpop.f32.mrb[0].mxu0
      %v290 = vadd.f32 0.0, %v289
      %v291 = vpop.f32.mrb[0].mxu0
      %292 = vmatprep.mubr.f32.mxu0 0.0
      %293 = vmatmul.mubr.f32.gmra.mrb[0].mxu0 %v177
      %v294 = vpop.f32.mrb[0].mxu0
      %v295 = vadd.f32 0.0, %v294
      %v296 = vpop.f32.mrb[0].mxu0
      %297 = vmatprep.mubr.f32.mxu0 0.0
      %298 = vmatmul.mubr.f32.gmra.mrb[0].mxu0 %v180
      %v299 = vpop.f32.mrb[0].mxu0
      %v300 = vadd.f32 0.0, %v299
      %v301 = vpop.f32.mrb[0].mxu0
      %302 = vmatprep.mubr.f32.mxu0 0.0
      %303 = vmatmul.mubr.f32.gmra.mrb[0].mxu0 %v183
      %v304 = vpop.f32.mrb[0].mxu0
      %v305 = vadd.f32 0.0, %v304
      %v306 = vpop.f32.mrb[0].mxu0
      %307 = vmatprep.mubr.f32.mxu0 0.0
      %308 = vmatmul.mubr.f32.gmra.mrb[0].mxu0 %v186
      %v309 = vpop.f32.mrb[0].mxu0
      %v310 = vadd.f32 0.0, %v309
      %v311 = vpop.f32.mrb[0].mxu0
      %312 = vmatprep.mubr.f32.mxu0 0.0
      %313 = vmatmul.mubr.f32.gmra.mrb[0].mxu0 %v189
      %v314 = vpop.f32.mrb[0].mxu0
      %v315 = vadd.f32 0.0, %v314
      %v316 = vpop.f32.mrb[0].mxu0
      %317 = vmatprep.mubr.f32.mxu0 0.0
      %318 = vmatmul.mubr.f32.gmra.mrb[0].mxu0 %v192
      %v319 = vpop.f32.mrb[0].mxu0
      %v320 = vadd.f32 0.0, %v319
      %v321 = vpop.f32.mrb[0].mxu0
      %322 = vmatprep.mubr.f32.mxu0 0.0
      %323 = vmatmul.mubr.f32.gmra.mrb[0].mxu0 %v195
      %v324 = vpop.f32.mrb[0].mxu0
      %v325 = vadd.f32 0.0, %v324
      %v326 = vpop.f32.mrb[0].mxu0
      %327 = vmatprep.mubr.f32.mxu0 0.0
      %328 = vmatmul.mubr.f32.gmra.mrb[0].mxu0 %v198
      %v329 = vpop.f32.mrb[0].mxu0
      %v330 = vadd.f32 0.0, %v329
      %v331 = vpop.f32.mrb[0].mxu0
      %332 = vmatprep.mubr.f32.mxu0 0.0
      %333 = vmatmul.mubr.f32.gmra.mrb[0].mxu0 %v201
      %v334 = vpop.f32.mrb[0].mxu0
      %v335 = vadd.f32 0.0, %v334
      %v336 = vpop.f32.mrb[0].mxu0
      %337 = vmatprep.mubr.f32.mxu0 0.0
      %338 = vmatmul.mubr.f32.gmra.mrb[0].mxu0 %v204
      %v339 = vpop.f32.mrb[0].mxu0
      %v340 = vadd.f32 0.0, %v339
      %v341 = vpop.f32.mrb[0].mxu0
      %342 = vmatprep.mubr.f32.mxu0 0.0
      %343 = vmatmul.mubr.f32.gmra.mrb[0].mxu0 %v207
      %v344 = vpop.f32.mrb[0].mxu0
      %v345 = vadd.f32 0.0, %v344
      %v346 = vpop.f32.mrb[0].mxu0
      %347 = vmatprep.mubr.f32.mxu0 0.0
      %348 = vmatmul.mubr.f32.gmra.mrb[0].mxu0 %v210
      %v349 = vpop.f32.mrb[0].mxu0
      %v350 = vadd.f32 0.0, %v349
      %v351 = vpop.f32.mrb[0].mxu0
      %352 = vmatprep.mubr.f32.mxu0 0.0
      %353 = vmatmul.mubr.f32.gmra.mrb[0].mxu0 %v213
      %v354 = vpop.f32.mrb[0].mxu0
      %v355 = vadd.f32 0.0, %v354
      %v356 = vpop.f32.mrb[0].mxu0
      %357 = vmatprep.mubr.f32.mxu0 0.0
      %358 = vmatmul.mubr.f32.gmra.mrb[0].mxu0 %v216
      %v359 = vpop.f32.mrb[0].mxu0
      %v360 = vadd.f32 0.0, %v359
      %v361 = vpop.f32.mrb[0].mxu0
      %362 = vdwg.mxu0
      %365 = vrot.lane.b32.xlu0 %v285, 96
      %v366 = vpop.permute.xlu0 %365
      %367 = vrot.lane.b32.xlu0 %v290, 96
      %v368 = vpop.permute.xlu0 %367
      %v369 = vsel %vm169, %v285, 0
      %v371 = vsel %vm169, %v290, 0
      %v373 = vsel %vm169, %v366, 0
      %v375 = vsel %vm169, %v368, 0
      %377 = vmatprep.subr.mxu0 0.0
      %378 = vmatpush1.xpose.msra.mxu0 %v373
      %379 = vmatprep.subr.mxu0 0.0
      %380 = vmatpush1.xpose.msra.mxu0 %v375
      %381 = vmatprep.subr.mxu0 0.0
      %382 = vmatpush1.xpose.msra.mxu0 0.0
      %383 = vmatprep.subr.mxu0 0.0
      %384 = vmatpush1.xpose.msra.mxu0 0.0
      %385 = vmatprep.subr.mxu0 0.0
      %386 = vmatpush1.xpose.msra.mxu0 0.0
      %387 = vmatprep.subr.mxu0 0.0
      %388 = vmatpush1.xpose.msra.mxu0 0.0
      %389 = vmatprep.subr.mxu0 0.0
      %390 = vmatpush1.xpose.msra.mxu0 0.0
      %391 = vmatprep.subr.mxu0 0.0
      %392 = vmatpush1.xpose.msra.mxu0 0.0
      %393 = vmatprep.subr.mxu0 0.0
      %394 = vmatpush1.xpose.msra.mxu0 0.0
      %395 = vmatprep.subr.mxu0 0.0
      %396 = vmatpush1.xpose.msra.mxu0 0.0
      %397 = vmatprep.subr.mxu0 0.0
      %398 = vmatpush1.xpose.msra.mxu0 0.0
      %399 = vmatprep.subr.mxu0 0.0
      %400 = vmatpush1.xpose.msra.mxu0 0.0
      %401 = vmatprep.subr.mxu0 0.0
      %402 = vmatpush1.xpose.msra.mxu0 0.0
      %403 = vmatprep.subr.mxu0 0.0
      %404 = vmatpush1.xpose.msra.mxu0 0.0
      %405 = vmatprep.subr.mxu0 0.0
      %406 = vmatpush1.xpose.msra.mxu0 0.0
      %407 = vmatprep.subr.mxu0 0.0
      %408 = vmatpush1.xpose.msra.mxu0 0.0
      %409 = vmatprep.subr.mxu0 0.0
      %410 = vmatpush1.xpose.msra.mxu0 0.0
      %411 = vmatprep.subr.mxu0 0.0
      %412 = vmatpush1.xpose.msra.mxu0 0.0
      %413 = vmatprep.subr.mxu0 0.0
      %414 = vmatpush1.xpose.msra.mxu0 0.0
      %415 = vmatprep.subr.mxu0 0.0
      %416 = vmatpush1.xpose.msra.mxu0 0.0
      %417 = vmatprep.subr.mxu0 0.0
      %418 = vmatpush1.xpose.msra.mxu0 0.0
      %419 = vmatprep.subr.mxu0 0.0
      %420 = vmatpush1.xpose.msra.mxu0 0.0
      %421 = vmatprep.subr.mxu0 0.0
      %422 = vmatpush1.xpose.msra.mxu0 0.0
      %423 = vmatprep.subr.mxu0 0.0
      %424 = vmatpush1.xpose.msra.mxu0 0.0
      %425 = vmatprep.subr.mxu0 0.0
      %426 = vmatpush1.xpose.msra.mxu0 0.0
      %427 = vmatprep.subr.mxu0 0.0
      %428 = vmatpush1.xpose.msra.mxu0 0.0
      %429 = vmatprep.subr.mxu0 0.0
      %430 = vmatpush1.xpose.msra.mxu0 0.0
      %431 = vmatprep.subr.mxu0 0.0
      %432 = vmatpush1.xpose.msra.mxu0 0.0
      %433 = vmatprep.subr.mxu0 0.0
      %434 = vmatpush1.xpose.msra.mxu0 0.0
      %435 = vmatprep.subr.mxu0 0.0
      %436 = vmatpush1.xpose.msra.mxu0 0.0
      %437 = vmatprep.subr.mxu0 0.0
      %438 = vmatpush1.xpose.msra.mxu0 0.0
      %439 = vmatprep.subr.mxu0 0.0
      %440 = vmatpush1.xpose.msra.mxu0 0.0
      %441 = vmatprep.mubr.f32.mxu0 0.0
      %442 = vmatmul.mubr.f32.gmra.mrb[0].mxu0 %v369
      %v443 = vpop.f32.mrb[0].mxu0
      %v444 = vadd.f32 0.0, %v443
      %v445 = vpop.f32.mrb[0].mxu0
      %446 = vmatprep.mubr.f32.mxu0 0.0
      %447 = vmatmul.mubr.f32.gmra.mrb[0].mxu0 %v371
      %v448 = vpop.f32.mrb[0].mxu0
      %v449 = vadd.f32 0.0, %v448
      %v450 = vpop.f32.mrb[0].mxu0
      %451 = vdwg.mxu0
      %454 = vrot.lane.b32.xlu0 %v295, 96
      %v455 = vpop.permute.xlu0 %454
      %456 = vrot.lane.b32.xlu0 %v300, 96
      %v457 = vpop.permute.xlu0 %456
      %v458 = vsel %vm169, %v295, 0
      %v460 = vsel %vm169, %v300, 0
      %v462 = vsel %vm169, %v455, 0
      %v464 = vsel %vm169, %v457, 0
      %466 = vmatprep.subr.mxu0 0.0
      %467 = vmatpush1.xpose.msra.mxu0 %v462
      %468 = vmatprep.subr.mxu0 0.0
      %469 = vmatpush1.xpose.msra.mxu0 %v464
      %470 = vmatprep.subr.mxu0 0.0
      %471 = vmatpush1.xpose.msra.mxu0 0.0
      %472 = vmatprep.subr.mxu0 0.0
      %473 = vmatpush1.xpose.msra.mxu0 0.0
      %474 = vmatprep.subr.mxu0 0.0
      %475 = vmatpush1.xpose.msra.mxu0 0.0
      %476 = vmatprep.subr.mxu0 0.0
      %477 = vmatpush1.xpose.msra.mxu0 0.0
      %478 = vmatprep.subr.mxu0 0.0
      %479 = vmatpush1.xpose.msra.mxu0 0.0
      %480 = vmatprep.subr.mxu0 0.0
      %481 = vmatpush1.xpose.msra.mxu0 0.0
      %482 = vmatprep.subr.mxu0 0.0
      %483 = vmatpush1.xpose.msra.mxu0 0.0
      %484 = vmatprep.subr.mxu0 0.0
      %485 = vmatpush1.xpose.msra.mxu0 0.0
      %486 = vmatprep.subr.mxu0 0.0
      %487 = vmatpush1.xpose.msra.mxu0 0.0
      %488 = vmatprep.subr.mxu0 0.0
      %489 = vmatpush1.xpose.msra.mxu0 0.0
      %490 = vmatprep.subr.mxu0 0.0
      %491 = vmatpush1.xpose.msra.mxu0 0.0
      %492 = vmatprep.subr.mxu0 0.0
      %493 = vmatpush1.xpose.msra.mxu0 0.0
      %494 = vmatprep.subr.mxu0 0.0
      %495 = vmatpush1.xpose.msra.mxu0 0.0
      %496 = vmatprep.subr.mxu0 0.0
      %497 = vmatpush1.xpose.msra.mxu0 0.0
      %498 = vmatprep.subr.mxu0 0.0
      %499 = vmatpush1.xpose.msra.mxu0 0.0
      %500 = vmatprep.subr.mxu0 0.0
      %501 = vmatpush1.xpose.msra.mxu0 0.0
      %502 = vmatprep.subr.mxu0 0.0
      %503 = vmatpush1.xpose.msra.mxu0 0.0
      %504 = vmatprep.subr.mxu0 0.0
      %505 = vmatpush1.xpose.msra.mxu0 0.0
      %506 = vmatprep.subr.mxu0 0.0
      %507 = vmatpush1.xpose.msra.mxu0 0.0
      %508 = vmatprep.subr.mxu0 0.0
      %509 = vmatpush1.xpose.msra.mxu0 0.0
      %510 = vmatprep.subr.mxu0 0.0
      %511 = vmatpush1.xpose.msra.mxu0 0.0
      %512 = vmatprep.subr.mxu0 0.0
      %513 = vmatpush1.xpose.msra.mxu0 0.0
      %514 = vmatprep.subr.mxu0 0.0
      %515 = vmatpush1.xpose.msra.mxu0 0.0
      %516 = vmatprep.subr.mxu0 0.0
      %517 = vmatpush1.xpose.msra.mxu0 0.0
      %518 = vmatprep.subr.mxu0 0.0
      %519 = vmatpush1.xpose.msra.mxu0 0.0
      %520 = vmatprep.subr.mxu0 0.0
      %521 = vmatpush1.xpose.msra.mxu0 0.0
      %522 = vmatprep.subr.mxu0 0.0
      %523 = vmatpush1.xpose.msra.mxu0 0.0
      %524 = vmatprep.subr.mxu0 0.0
      %525 = vmatpush1.xpose.msra.mxu0 0.0
      %526 = vmatprep.subr.mxu0 0.0
      %527 = vmatpush1.xpose.msra.mxu0 0.0
      %528 = vmatprep.subr.mxu0 0.0
      %529 = vmatpush1.xpose.msra.mxu0 0.0
      %530 = vmatprep.mubr.f32.mxu0 0.0
      %531 = vmatmul.mubr.f32.gmra.mrb[0].mxu0 %v458
      %v532 = vpop.f32.mrb[0].mxu0
      %v533 = vadd.f32 0.0, %v532
      %v534 = vpop.f32.mrb[0].mxu0
      %535 = vmatprep.mubr.f32.mxu0 0.0
      %536 = vmatmul.mubr.f32.gmra.mrb[0].mxu0 %v460
      %v537 = vpop.f32.mrb[0].mxu0
      %v538 = vadd.f32 0.0, %v537
      %v539 = vpop.f32.mrb[0].mxu0
      %540 = vdwg.mxu0
      %543 = vrot.lane.b32.xlu0 %v305, 96
      %v544 = vpop.permute.xlu0 %543
      %545 = vrot.lane.b32.xlu0 %v310, 96
      %v546 = vpop.permute.xlu0 %545
      %v547 = vsel %vm169, %v305, 0
      %v549 = vsel %vm169, %v310, 0
      %v551 = vsel %vm169, %v544, 0
      %v553 = vsel %vm169, %v546, 0
      %555 = vmatprep.subr.mxu0 0.0
      %556 = vmatpush1.xpose.msra.mxu0 %v551
      %557 = vmatprep.subr.mxu0 0.0
      %558 = vmatpush1.xpose.msra.mxu0 %v553
      %559 = vmatprep.subr.mxu0 0.0
      %560 = vmatpush1.xpose.msra.mxu0 0.0
      %561 = vmatprep.subr.mxu0 0.0
      %562 = vmatpush1.xpose.msra.mxu0 0.0
      %563 = vmatprep.subr.mxu0 0.0
      %564 = vmatpush1.xpose.msra.mxu0 0.0
      %565 = vmatprep.subr.mxu0 0.0
      %566 = vmatpush1.xpose.msra.mxu0 0.0
      %567 = vmatprep.subr.mxu0 0.0
      %568 = vmatpush1.xpose.msra.mxu0 0.0
      %569 = vmatprep.subr.mxu0 0.0
      %570 = vmatpush1.xpose.msra.mxu0 0.0
      %571 = vmatprep.subr.mxu0 0.0
      %572 = vmatpush1.xpose.msra.mxu0 0.0
      %573 = vmatprep.subr.mxu0 0.0
      %574 = vmatpush1.xpose.msra.mxu0 0.0
      %575 = vmatprep.subr.mxu0 0.0
      %576 = vmatpush1.xpose.msra.mxu0 0.0
      %577 = vmatprep.subr.mxu0 0.0
      %578 = vmatpush1.xpose.msra.mxu0 0.0
      %579 = vmatprep.subr.mxu0 0.0
      %580 = vmatpush1.xpose.msra.mxu0 0.0
      %581 = vmatprep.subr.mxu0 0.0
      %582 = vmatpush1.xpose.msra.mxu0 0.0
      %583 = vmatprep.subr.mxu0 0.0
      %584 = vmatpush1.xpose.msra.mxu0 0.0
      %585 = vmatprep.subr.mxu0 0.0
      %586 = vmatpush1.xpose.msra.mxu0 0.0
      %587 = vmatprep.subr.mxu0 0.0
      %588 = vmatpush1.xpose.msra.mxu0 0.0
      %589 = vmatprep.subr.mxu0 0.0
      %590 = vmatpush1.xpose.msra.mxu0 0.0
      %591 = vmatprep.subr.mxu0 0.0
      %592 = vmatpush1.xpose.msra.mxu0 0.0
      %593 = vmatprep.subr.mxu0 0.0
      %594 = vmatpush1.xpose.msra.mxu0 0.0
      %595 = vmatprep.subr.mxu0 0.0
      %596 = vmatpush1.xpose.msra.mxu0 0.0
      %597 = vmatprep.subr.mxu0 0.0
      %598 = vmatpush1.xpose.msra.mxu0 0.0
      %599 = vmatprep.subr.mxu0 0.0
      %600 = vmatpush1.xpose.msra.mxu0 0.0
      %601 = vmatprep.subr.mxu0 0.0
      %602 = vmatpush1.xpose.msra.mxu0 0.0
      %603 = vmatprep.subr.mxu0 0.0
      %604 = vmatpush1.xpose.msra.mxu0 0.0
      %605 = vmatprep.subr.mxu0 0.0
      %606 = vmatpush1.xpose.msra.mxu0 0.0
      %607 = vmatprep.subr.mxu0 0.0
      %608 = vmatpush1.xpose.msra.mxu0 0.0
      %609 = vmatprep.subr.mxu0 0.0
      %610 = vmatpush1.xpose.msra.mxu0 0.0
      %611 = vmatprep.subr.mxu0 0.0
      %612 = vmatpush1.xpose.msra.mxu0 0.0
      %613 = vmatprep.subr.mxu0 0.0
      %614 = vmatpush1.xpose.msra.mxu0 0.0
      %615 = vmatprep.subr.mxu0 0.0
      %616 = vmatpush1.xpose.msra.mxu0 0.0
      %617 = vmatprep.subr.mxu0 0.0
      %618 = vmatpush1.xpose.msra.mxu0 0.0
      %619 = vmatprep.mubr.f32.mxu0 0.0
      %620 = vmatmul.mubr.f32.gmra.mrb[0].mxu0 %v547
      %v621 = vpop.f32.mrb[0].mxu0
      %v622 = vadd.f32 0.0, %v621
      %v623 = vpop.f32.mrb[0].mxu0
      %624 = vmatprep.mubr.f32.mxu0 0.0
      %625 = vmatmul.mubr.f32.gmra.mrb[0].mxu0 %v549
      %v626 = vpop.f32.mrb[0].mxu0
      %v627 = vadd.f32 0.0, %v626
      %v628 = vpop.f32.mrb[0].mxu0
      %629 = vdwg.mxu0
      %632 = vrot.lane.b32.xlu0 %v315, 96
      %v633 = vpop.permute.xlu0 %632
      %634 = vrot.lane.b32.xlu0 %v320, 96
      %v635 = vpop.permute.xlu0 %634
      %v636 = vsel %vm169, %v315, 0
      %v638 = vsel %vm169, %v320, 0
      %v640 = vsel %vm169, %v633, 0
      %v642 = vsel %vm169, %v635, 0
      %644 = vmatprep.subr.mxu0 0.0
      %645 = vmatpush1.xpose.msra.mxu0 %v640
      %646 = vmatprep.subr.mxu0 0.0
      %647 = vmatpush1.xpose.msra.mxu0 %v642
      %648 = vmatprep.subr.mxu0 0.0
      %649 = vmatpush1.xpose.msra.mxu0 0.0
      %650 = vmatprep.subr.mxu0 0.0
      %651 = vmatpush1.xpose.msra.mxu0 0.0
      %652 = vmatprep.subr.mxu0 0.0
      %653 = vmatpush1.xpose.msra.mxu0 0.0
      %654 = vmatprep.subr.mxu0 0.0
      %655 = vmatpush1.xpose.msra.mxu0 0.0
      %656 = vmatprep.subr.mxu0 0.0
      %657 = vmatpush1.xpose.msra.mxu0 0.0
      %658 = vmatprep.subr.mxu0 0.0
      %659 = vmatpush1.xpose.msra.mxu0 0.0
      %660 = vmatprep.subr.mxu0 0.0
      %661 = vmatpush1.xpose.msra.mxu0 0.0
      %662 = vmatprep.subr.mxu0 0.0
      %663 = vmatpush1.xpose.msra.mxu0 0.0
      %664 = vmatprep.subr.mxu0 0.0
      %665 = vmatpush1.xpose.msra.mxu0 0.0
      %666 = vmatprep.subr.mxu0 0.0
      %667 = vmatpush1.xpose.msra.mxu0 0.0
      %668 = vmatprep.subr.mxu0 0.0
      %669 = vmatpush1.xpose.msra.mxu0 0.0
      %670 = vmatprep.subr.mxu0 0.0
      %671 = vmatpush1.xpose.msra.mxu0 0.0
      %672 = vmatprep.subr.mxu0 0.0
      %673 = vmatpush1.xpose.msra.mxu0 0.0
      %674 = vmatprep.subr.mxu0 0.0
      %675 = vmatpush1.xpose.msra.mxu0 0.0
      %676 = vmatprep.subr.mxu0 0.0
      %677 = vmatpush1.xpose.msra.mxu0 0.0
      %678 = vmatprep.subr.mxu0 0.0
      %679 = vmatpush1.xpose.msra.mxu0 0.0
      %680 = vmatprep.subr.mxu0 0.0
      %681 = vmatpush1.xpose.msra.mxu0 0.0
      %682 = vmatprep.subr.mxu0 0.0
      %683 = vmatpush1.xpose.msra.mxu0 0.0
      %684 = vmatprep.subr.mxu0 0.0
      %685 = vmatpush1.xpose.msra.mxu0 0.0
      %686 = vmatprep.subr.mxu0 0.0
      %687 = vmatpush1.xpose.msra.mxu0 0.0
      %688 = vmatprep.subr.mxu0 0.0
      %689 = vmatpush1.xpose.msra.mxu0 0.0
      %690 = vmatprep.subr.mxu0 0.0
      %691 = vmatpush1.xpose.msra.mxu0 0.0
      %692 = vmatprep.subr.mxu0 0.0
      %693 = vmatpush1.xpose.msra.mxu0 0.0
      %694 = vmatprep.subr.mxu0 0.0
      %695 = vmatpush1.xpose.msra.mxu0 0.0
      %696 = vmatprep.subr.mxu0 0.0
      %697 = vmatpush1.xpose.msra.mxu0 0.0
      %698 = vmatprep.subr.mxu0 0.0
      %699 = vmatpush1.xpose.msra.mxu0 0.0
      %700 = vmatprep.subr.mxu0 0.0
      %701 = vmatpush1.xpose.msra.mxu0 0.0
      %702 = vmatprep.subr.mxu0 0.0
      %703 = vmatpush1.xpose.msra.mxu0 0.0
      %704 = vmatprep.subr.mxu0 0.0
      %705 = vmatpush1.xpose.msra.mxu0 0.0
      %706 = vmatprep.subr.mxu0 0.0
      %707 = vmatpush1.xpose.msra.mxu0 0.0
      %708 = vmatprep.mubr.f32.mxu0 0.0
      %709 = vmatmul.mubr.f32.gmra.mrb[0].mxu0 %v636
      %v710 = vpop.f32.mrb[0].mxu0
      %v711 = vadd.f32 0.0, %v710
      %v712 = vpop.f32.mrb[0].mxu0
      %713 = vmatprep.mubr.f32.mxu0 0.0
      %714 = vmatmul.mubr.f32.gmra.mrb[0].mxu0 %v638
      %v715 = vpop.f32.mrb[0].mxu0
      %v716 = vadd.f32 0.0, %v715
      %v717 = vpop.f32.mrb[0].mxu0
      %718 = vdwg.mxu0
      %721 = vrot.lane.b32.xlu0 %v325, 96
      %v722 = vpop.permute.xlu0 %721
      %723 = vrot.lane.b32.xlu0 %v330, 96
      %v724 = vpop.permute.xlu0 %723
      %v725 = vsel %vm169, %v325, 0
      %v727 = vsel %vm169, %v330, 0
      %v729 = vsel %vm169, %v722, 0
      %v731 = vsel %vm169, %v724, 0
      %733 = vmatprep.subr.mxu0 0.0
      %734 = vmatpush1.xpose.msra.mxu0 %v729
      %735 = vmatprep.subr.mxu0 0.0
      %736 = vmatpush1.xpose.msra.mxu0 %v731
      %737 = vmatprep.subr.mxu0 0.0
      %738 = vmatpush1.xpose.msra.mxu0 0.0
      %739 = vmatprep.subr.mxu0 0.0
      %740 = vmatpush1.xpose.msra.mxu0 0.0
      %741 = vmatprep.subr.mxu0 0.0
      %742 = vmatpush1.xpose.msra.mxu0 0.0
      %743 = vmatprep.subr.mxu0 0.0
      %744 = vmatpush1.xpose.msra.mxu0 0.0
      %745 = vmatprep.subr.mxu0 0.0
      %746 = vmatpush1.xpose.msra.mxu0 0.0
      %747 = vmatprep.subr.mxu0 0.0
      %748 = vmatpush1.xpose.msra.mxu0 0.0
      %749 = vmatprep.subr.mxu0 0.0
      %750 = vmatpush1.xpose.msra.mxu0 0.0
      %751 = vmatprep.subr.mxu0 0.0
      %752 = vmatpush1.xpose.msra.mxu0 0.0
      %753 = vmatprep.subr.mxu0 0.0
      %754 = vmatpush1.xpose.msra.mxu0 0.0
      %755 = vmatprep.subr.mxu0 0.0
      %756 = vmatpush1.xpose.msra.mxu0 0.0
      %757 = vmatprep.subr.mxu0 0.0
      %758 = vmatpush1.xpose.msra.mxu0 0.0
      %759 = vmatprep.subr.mxu0 0.0
      %760 = vmatpush1.xpose.msra.mxu0 0.0
      %761 = vmatprep.subr.mxu0 0.0
      %762 = vmatpush1.xpose.msra.mxu0 0.0
      %763 = vmatprep.subr.mxu0 0.0
      %764 = vmatpush1.xpose.msra.mxu0 0.0
      %765 = vmatprep.subr.mxu0 0.0
      %766 = vmatpush1.xpose.msra.mxu0 0.0
      %767 = vmatprep.subr.mxu0 0.0
      %768 = vmatpush1.xpose.msra.mxu0 0.0
      %769 = vmatprep.subr.mxu0 0.0
      %770 = vmatpush1.xpose.msra.mxu0 0.0
      %771 = vmatprep.subr.mxu0 0.0
      %772 = vmatpush1.xpose.msra.mxu0 0.0
      %773 = vmatprep.subr.mxu0 0.0
      %774 = vmatpush1.xpose.msra.mxu0 0.0
      %775 = vmatprep.subr.mxu0 0.0
      %776 = vmatpush1.xpose.msra.mxu0 0.0
      %777 = vmatprep.subr.mxu0 0.0
      %778 = vmatpush1.xpose.msra.mxu0 0.0
      %779 = vmatprep.subr.mxu0 0.0
      %780 = vmatpush1.xpose.msra.mxu0 0.0
      %781 = vmatprep.subr.mxu0 0.0
      %782 = vmatpush1.xpose.msra.mxu0 0.0
      %783 = vmatprep.subr.mxu0 0.0
      %784 = vmatpush1.xpose.msra.mxu0 0.0
      %785 = vmatprep.subr.mxu0 0.0
      %786 = vmatpush1.xpose.msra.mxu0 0.0
      %787 = vmatprep.subr.mxu0 0.0
      %788 = vmatpush1.xpose.msra.mxu0 0.0
      %789 = vmatprep.subr.mxu0 0.0
      %790 = vmatpush1.xpose.msra.mxu0 0.0
      %791 = vmatprep.subr.mxu0 0.0
      %792 = vmatpush1.xpose.msra.mxu0 0.0
      %793 = vmatprep.subr.mxu0 0.0
      %794 = vmatpush1.xpose.msra.mxu0 0.0
      %795 = vmatprep.subr.mxu0 0.0
      %796 = vmatpush1.xpose.msra.mxu0 0.0
      %797 = vmatprep.mubr.f32.mxu0 0.0
      %798 = vmatmul.mubr.f32.gmra.mrb[0].mxu0 %v725
      %v799 = vpop.f32.mrb[0].mxu0
      %v800 = vadd.f32 0.0, %v799
      %v801 = vpop.f32.mrb[0].mxu0
      %802 = vmatprep.mubr.f32.mxu0 0.0
      %803 = vmatmul.mubr.f32.gmra.mrb[0].mxu0 %v727
      %v804 = vpop.f32.mrb[0].mxu0
      %v805 = vadd.f32 0.0, %v804
      %v806 = vpop.f32.mrb[0].mxu0
      %807 = vdwg.mxu0
      %810 = vrot.lane.b32.xlu0 %v335, 96
      %v811 = vpop.permute.xlu0 %810
      %812 = vrot.lane.b32.xlu0 %v340, 96
      %v813 = vpop.permute.xlu0 %812
      %v814 = vsel %vm169, %v335, 0
      %v816 = vsel %vm169, %v340, 0
      %v818 = vsel %vm169, %v811, 0
      %v820 = vsel %vm169, %v813, 0
      %822 = vmatprep.subr.mxu0 0.0
      %823 = vmatpush1.xpose.msra.mxu0 %v818
      %824 = vmatprep.subr.mxu0 0.0
      %825 = vmatpush1.xpose.msra.mxu0 %v820
      %826 = vmatprep.subr.mxu0 0.0
      %827 = vmatpush1.xpose.msra.mxu0 0.0
      %828 = vmatprep.subr.mxu0 0.0
      %829 = vmatpush1.xpose.msra.mxu0 0.0
      %830 = vmatprep.subr.mxu0 0.0
      %831 = vmatpush1.xpose.msra.mxu0 0.0
      %832 = vmatprep.subr.mxu0 0.0
      %833 = vmatpush1.xpose.msra.mxu0 0.0
      %834 = vmatprep.subr.mxu0 0.0
      %835 = vmatpush1.xpose.msra.mxu0 0.0
      %836 = vmatprep.subr.mxu0 0.0
      %837 = vmatpush1.xpose.msra.mxu0 0.0
      %838 = vmatprep.subr.mxu0 0.0
      %839 = vmatpush1.xpose.msra.mxu0 0.0
      %840 = vmatprep.subr.mxu0 0.0
      %841 = vmatpush1.xpose.msra.mxu0 0.0
      %842 = vmatprep.subr.mxu0 0.0
      %843 = vmatpush1.xpose.msra.mxu0 0.0
      %844 = vmatprep.subr.mxu0 0.0
      %845 = vmatpush1.xpose.msra.mxu0 0.0
      %846 = vmatprep.subr.mxu0 0.0
      %847 = vmatpush1.xpose.msra.mxu0 0.0
      %848 = vmatprep.subr.mxu0 0.0
      %849 = vmatpush1.xpose.msra.mxu0 0.0
      %850 = vmatprep.subr.mxu0 0.0
      %851 = vmatpush1.xpose.msra.mxu0 0.0
      %852 = vmatprep.subr.mxu0 0.0
      %853 = vmatpush1.xpose.msra.mxu0 0.0
      %854 = vmatprep.subr.mxu0 0.0
      %855 = vmatpush1.xpose.msra.mxu0 0.0
      %856 = vmatprep.subr.mxu0 0.0
      %857 = vmatpush1.xpose.msra.mxu0 0.0
      %858 = vmatprep.subr.mxu0 0.0
      %859 = vmatpush1.xpose.msra.mxu0 0.0
      %860 = vmatprep.subr.mxu0 0.0
      %861 = vmatpush1.xpose.msra.mxu0 0.0
      %862 = vmatprep.subr.mxu0 0.0
      %863 = vmatpush1.xpose.msra.mxu0 0.0
      %864 = vmatprep.subr.mxu0 0.0
      %865 = vmatpush1.xpose.msra.mxu0 0.0
      %866 = vmatprep.subr.mxu0 0.0
      %867 = vmatpush1.xpose.msra.mxu0 0.0
      %868 = vmatprep.subr.mxu0 0.0
      %869 = vmatpush1.xpose.msra.mxu0 0.0
      %870 = vmatprep.subr.mxu0 0.0
      %871 = vmatpush1.xpose.msra.mxu0 0.0
      %872 = vmatprep.subr.mxu0 0.0
      %873 = vmatpush1.xpose.msra.mxu0 0.0
      %874 = vmatprep.subr.mxu0 0.0
      %875 = vmatpush1.xpose.msra.mxu0 0.0
      %876 = vmatprep.subr.mxu0 0.0
      %877 = vmatpush1.xpose.msra.mxu0 0.0
      %878 = vmatprep.subr.mxu0 0.0
      %879 = vmatpush1.xpose.msra.mxu0 0.0
      %880 = vmatprep.subr.mxu0 0.0
      %881 = vmatpush1.xpose.msra.mxu0 0.0
      %882 = vmatprep.subr.mxu0 0.0
      %883 = vmatpush1.xpose.msra.mxu0 0.0
      %884 = vmatprep.subr.mxu0 0.0
      %885 = vmatpush1.xpose.msra.mxu0 0.0
      %886 = vmatprep.mubr.f32.mxu0 0.0
      %887 = vmatmul.mubr.f32.gmra.mrb[0].mxu0 %v814
      %v888 = vpop.f32.mrb[0].mxu0
      %v889 = vadd.f32 0.0, %v888
      %v890 = vpop.f32.mrb[0].mxu0
      %891 = vmatprep.mubr.f32.mxu0 0.0
      %892 = vmatmul.mubr.f32.gmra.mrb[0].mxu0 %v816
      %v893 = vpop.f32.mrb[0].mxu0
      %v894 = vadd.f32 0.0, %v893
      %v895 = vpop.f32.mrb[0].mxu0
      %896 = vdwg.mxu0
      %899 = vrot.lane.b32.xlu0 %v345, 96
      %v900 = vpop.permute.xlu0 %899
      %901 = vrot.lane.b32.xlu0 %v350, 96
      %v902 = vpop.permute.xlu0 %901
      %v903 = vsel %vm169, %v345, 0
      %v905 = vsel %vm169, %v350, 0
      %v907 = vsel %vm169, %v900, 0
      %v909 = vsel %vm169, %v902, 0
      %911 = vmatprep.subr.mxu0 0.0
      %912 = vmatpush1.xpose.msra.mxu0 %v907
      %913 = vmatprep.subr.mxu0 0.0
      %914 = vmatpush1.xpose.msra.mxu0 %v909
      %915 = vmatprep.subr.mxu0 0.0
      %916 = vmatpush1.xpose.msra.mxu0 0.0
      %917 = vmatprep.subr.mxu0 0.0
      %918 = vmatpush1.xpose.msra.mxu0 0.0
      %919 = vmatprep.subr.mxu0 0.0
      %920 = vmatpush1.xpose.msra.mxu0 0.0
      %921 = vmatprep.subr.mxu0 0.0
      %922 = vmatpush1.xpose.msra.mxu0 0.0
      %923 = vmatprep.subr.mxu0 0.0
      %924 = vmatpush1.xpose.msra.mxu0 0.0
      %925 = vmatprep.subr.mxu0 0.0
      %926 = vmatpush1.xpose.msra.mxu0 0.0
      %927 = vmatprep.subr.mxu0 0.0
      %928 = vmatpush1.xpose.msra.mxu0 0.0
      %929 = vmatprep.subr.mxu0 0.0
      %930 = vmatpush1.xpose.msra.mxu0 0.0
      %931 = vmatprep.subr.mxu0 0.0
      %932 = vmatpush1.xpose.msra.mxu0 0.0
      %933 = vmatprep.subr.mxu0 0.0
      %934 = vmatpush1.xpose.msra.mxu0 0.0
      %935 = vmatprep.subr.mxu0 0.0
      %936 = vmatpush1.xpose.msra.mxu0 0.0
      %937 = vmatprep.subr.mxu0 0.0
      %938 = vmatpush1.xpose.msra.mxu0 0.0
      %939 = vmatprep.subr.mxu0 0.0
      %940 = vmatpush1.xpose.msra.mxu0 0.0
      %941 = vmatprep.subr.mxu0 0.0
      %942 = vmatpush1.xpose.msra.mxu0 0.0
      %943 = vmatprep.subr.mxu0 0.0
      %944 = vmatpush1.xpose.msra.mxu0 0.0
      %945 = vmatprep.subr.mxu0 0.0
      %946 = vmatpush1.xpose.msra.mxu0 0.0
      %947 = vmatprep.subr.mxu0 0.0
      %948 = vmatpush1.xpose.msra.mxu0 0.0
      %949 = vmatprep.subr.mxu0 0.0
      %950 = vmatpush1.xpose.msra.mxu0 0.0
      %951 = vmatprep.subr.mxu0 0.0
      %952 = vmatpush1.xpose.msra.mxu0 0.0
      %953 = vmatprep.subr.mxu0 0.0
      %954 = vmatpush1.xpose.msra.mxu0 0.0
      %955 = vmatprep.subr.mxu0 0.0
      %956 = vmatpush1.xpose.msra.mxu0 0.0
      %957 = vmatprep.subr.mxu0 0.0
      %958 = vmatpush1.xpose.msra.mxu0 0.0
      %959 = vmatprep.subr.mxu0 0.0
      %960 = vmatpush1.xpose.msra.mxu0 0.0
      %961 = vmatprep.subr.mxu0 0.0
      %962 = vmatpush1.xpose.msra.mxu0 0.0
      %963 = vmatprep.subr.mxu0 0.0
      %964 = vmatpush1.xpose.msra.mxu0 0.0
      %965 = vmatprep.subr.mxu0 0.0
      %966 = vmatpush1.xpose.msra.mxu0 0.0
      %967 = vmatprep.subr.mxu0 0.0
      %968 = vmatpush1.xpose.msra.mxu0 0.0
      %969 = vmatprep.subr.mxu0 0.0
      %970 = vmatpush1.xpose.msra.mxu0 0.0
      %971 = vmatprep.subr.mxu0 0.0
      %972 = vmatpush1.xpose.msra.mxu0 0.0
      %973 = vmatprep.subr.mxu0 0.0
      %974 = vmatpush1.xpose.msra.mxu0 0.0
      %975 = vmatprep.mubr.f32.mxu0 0.0
      %976 = vmatmul.mubr.f32.gmra.mrb[0].mxu0 %v903
      %v977 = vpop.f32.mrb[0].mxu0
      %v978 = vadd.f32 0.0, %v977
      %v979 = vpop.f32.mrb[0].mxu0
      %980 = vmatprep.mubr.f32.mxu0 0.0
      %981 = vmatmul.mubr.f32.gmra.mrb[0].mxu0 %v905
      %v982 = vpop.f32.mrb[0].mxu0
      %v983 = vadd.f32 0.0, %v982
      %v984 = vpop.f32.mrb[0].mxu0
      %985 = vdwg.mxu0
      %988 = vrot.lane.b32.xlu0 %v355, 96
      %v989 = vpop.permute.xlu0 %988
      %990 = vrot.lane.b32.xlu0 %v360, 96
      %v991 = vpop.permute.xlu0 %990
      %v992 = vsel %vm169, %v355, 0
      %v994 = vsel %vm169, %v360, 0
      %v996 = vsel %vm169, %v989, 0
      %v998 = vsel %vm169, %v991, 0
      %1000 = vmatprep.subr.mxu0 0.0
      %1001 = vmatpush1.xpose.msra.mxu0 %v996
      %1002 = vmatprep.subr.mxu0 0.0
      %1003 = vmatpush1.xpose.msra.mxu0 %v998
      %1004 = vmatprep.subr.mxu0 0.0
      %1005 = vmatpush1.xpose.msra.mxu0 0.0
      %1006 = vmatprep.subr.mxu0 0.0
      %1007 = vmatpush1.xpose.msra.mxu0 0.0
      %1008 = vmatprep.subr.mxu0 0.0
      %1009 = vmatpush1.xpose.msra.mxu0 0.0
      %1010 = vmatprep.subr.mxu0 0.0
      %1011 = vmatpush1.xpose.msra.mxu0 0.0
      %1012 = vmatprep.subr.mxu0 0.0
      %1013 = vmatpush1.xpose.msra.mxu0 0.0
      %1014 = vmatprep.subr.mxu0 0.0
      %1015 = vmatpush1.xpose.msra.mxu0 0.0
      %1016 = vmatprep.subr.mxu0 0.0
      %1017 = vmatpush1.xpose.msra.mxu0 0.0
      %1018 = vmatprep.subr.mxu0 0.0
      %1019 = vmatpush1.xpose.msra.mxu0 0.0
      %1020 = vmatprep.subr.mxu0 0.0
      %1021 = vmatpush1.xpose.msra.mxu0 0.0
      %1022 = vmatprep.subr.mxu0 0.0
      %1023 = vmatpush1.xpose.msra.mxu0 0.0
      %1024 = vmatprep.subr.mxu0 0.0
      %1025 = vmatpush1.xpose.msra.mxu0 0.0
      %1026 = vmatprep.subr.mxu0 0.0
      %1027 = vmatpush1.xpose.msra.mxu0 0.0
      %1028 = vmatprep.subr.mxu0 0.0
      %1029 = vmatpush1.xpose.msra.mxu0 0.0
      %1030 = vmatprep.subr.mxu0 0.0
      %1031 = vmatpush1.xpose.msra.mxu0 0.0
      %1032 = vmatprep.subr.mxu0 0.0
      %1033 = vmatpush1.xpose.msra.mxu0 0.0
      %1034 = vmatprep.subr.mxu0 0.0
      %1035 = vmatpush1.xpose.msra.mxu0 0.0
      %1036 = vmatprep.subr.mxu0 0.0
      %1037 = vmatpush1.xpose.msra.mxu0 0.0
      %1038 = vmatprep.subr.mxu0 0.0
      %1039 = vmatpush1.xpose.msra.mxu0 0.0
      %1040 = vmatprep.subr.mxu0 0.0
      %1041 = vmatpush1.xpose.msra.mxu0 0.0
      %1042 = vmatprep.subr.mxu0 0.0
      %1043 = vmatpush1.xpose.msra.mxu0 0.0
      %1044 = vmatprep.subr.mxu0 0.0
      %1045 = vmatpush1.xpose.msra.mxu0 0.0
      %1046 = vmatprep.subr.mxu0 0.0
      %1047 = vmatpush1.xpose.msra.mxu0 0.0
      %1048 = vmatprep.subr.mxu0 0.0
      %1049 = vmatpush1.xpose.msra.mxu0 0.0
      %1050 = vmatprep.subr.mxu0 0.0
      %1051 = vmatpush1.xpose.msra.mxu0 0.0
      %1052 = vmatprep.subr.mxu0 0.0
      %1053 = vmatpush1.xpose.msra.mxu0 0.0
      %1054 = vmatprep.subr.mxu0 0.0
      %1055 = vmatpush1.xpose.msra.mxu0 0.0
      %1056 = vmatprep.subr.mxu0 0.0
      %1057 = vmatpush1.xpose.msra.mxu0 0.0
      %1058 = vmatprep.subr.mxu0 0.0
      %1059 = vmatpush1.xpose.msra.mxu0 0.0
      %1060 = vmatprep.subr.mxu0 0.0
      %1061 = vmatpush1.xpose.msra.mxu0 0.0
      %1062 = vmatprep.subr.mxu0 0.0
      %1063 = vmatpush1.xpose.msra.mxu0 0.0
      %1064 = vmatprep.mubr.f32.mxu0 0.0
      %1065 = vmatmul.mubr.f32.gmra.mrb[0].mxu0 %v992
      %v1066 = vpop.f32.mrb[0].mxu0
      %v1067 = vadd.f32 0.0, %v1066
      %v1068 = vpop.f32.mrb[0].mxu0
      %1069 = vmatprep.mubr.f32.mxu0 0.0
      %1070 = vmatmul.mubr.f32.gmra.mrb[0].mxu0 %v994
      %v1071 = vpop.f32.mrb[0].mxu0
      %v1072 = vadd.f32 0.0, %v1071
      %v1073 = vpop.f32.mrb[0].mxu0
      %1074 = vdwg.mxu0
      %vm1075 = vcmask 130048
      %v1076 = vsel %vm1075, %v444, -inf
      %1077 = vmax.xlane.f32.xlu0 %v1076
      %v1078 = vpop.xlane.xlu0 %1077
      %v1079 = vsel %vm1075, %v449, -inf
      %1080 = vmax.xlane.f32.xlu0 %v1079
      %v1081 = vpop.xlane.xlu0 %1080
      %v1082 = vsel %vm1075, %v533, -inf
      %1083 = vmax.xlane.f32.xlu0 %v1082
      %v1084 = vpop.xlane.xlu0 %1083
      %v1085 = vsel %vm1075, %v538, -inf
      %1086 = vmax.xlane.f32.xlu0 %v1085
      %v1087 = vpop.xlane.xlu0 %1086
      %v1088 = vsel %vm1075, %v622, -inf
      %1089 = vmax.xlane.f32.xlu0 %v1088
      %v1090 = vpop.xlane.xlu0 %1089
      %v1091 = vsel %vm1075, %v627, -inf
      %1092 = vmax.xlane.f32.xlu0 %v1091
      %v1093 = vpop.xlane.xlu0 %1092
      %v1094 = vsel %vm1075, %v711, -inf
      %1095 = vmax.xlane.f32.xlu0 %v1094
      %v1096 = vpop.xlane.xlu0 %1095
      %v1097 = vsel %vm1075, %v716, -inf
      %1098 = vmax.xlane.f32.xlu0 %v1097
      %v1099 = vpop.xlane.xlu0 %1098
      %v1100 = vsel %vm1075, %v800, -inf
      %1101 = vmax.xlane.f32.xlu0 %v1100
      %v1102 = vpop.xlane.xlu0 %1101
      %v1103 = vsel %vm1075, %v805, -inf
      %1104 = vmax.xlane.f32.xlu0 %v1103
      %v1105 = vpop.xlane.xlu0 %1104
      %v1106 = vsel %vm1075, %v889, -inf
      %1107 = vmax.xlane.f32.xlu0 %v1106
      %v1108 = vpop.xlane.xlu0 %1107
      %v1109 = vsel %vm1075, %v894, -inf
      %1110 = vmax.xlane.f32.xlu0 %v1109
      %v1111 = vpop.xlane.xlu0 %1110
      %v1112 = vsel %vm1075, %v978, -inf
      %1113 = vmax.xlane.f32.xlu0 %v1112
      %v1114 = vpop.xlane.xlu0 %1113
      %v1115 = vsel %vm1075, %v983, -inf
      %1116 = vmax.xlane.f32.xlu0 %v1115
      %v1117 = vpop.xlane.xlu0 %1116
      %v1118 = vsel %vm1075, %v1067, -inf
      %1119 = vmax.xlane.f32.xlu0 %v1118
      %v1120 = vpop.xlane.xlu0 %1119
      %v1121 = vsel %vm1075, %v1072, -inf
      %1122 = vmax.xlane.f32.xlu0 %v1121
      %v1123 = vpop.xlane.xlu0 %1122
      %v1124 = vsub.f32 %v444, %v1078
      %v1125 = vsub.f32 %v449, %v1081
      %v1126 = vsub.f32 %v533, %v1084
      %v1127 = vsub.f32 %v538, %v1087
      %v1128 = vsub.f32 %v622, %v1090
      %v1129 = vsub.f32 %v627, %v1093
      %v1130 = vsub.f32 %v711, %v1096
      %v1131 = vsub.f32 %v716, %v1099
      %v1132 = vsub.f32 %v800, %v1102
      %v1133 = vsub.f32 %v805, %v1105
      %v1134 = vsub.f32 %v889, %v1108
      %v1135 = vsub.f32 %v894, %v1111
      %v1136 = vsub.f32 %v978, %v1114
      %v1137 = vsub.f32 %v983, %v1117
      %v1138 = vsub.f32 %v1067, %v1120
      %v1139 = vsub.f32 %v1072, %v1123
      %v1140 = vmul.f32 %v1124, 1.442695
      %v1141 = vpow.pop %v1140
      %v1142 = vmul.f32 %v1125, 1.442695
      %v1143 = vpow.pop %v1142
      %v1144 = vmul.f32 %v1126, 1.442695
      %v1145 = vpow.pop %v1144
      %v1146 = vmul.f32 %v1127, 1.442695
      %v1147 = vpow.pop %v1146
      %v1148 = vmul.f32 %v1128, 1.442695
      %v1149 = vpow.pop %v1148
      %v1150 = vmul.f32 %v1129, 1.442695
      %v1151 = vpow.pop %v1150
      %v1152 = vmul.f32 %v1130, 1.442695
      %v1153 = vpow.pop %v1152
      %v1154 = vmul.f32 %v1131, 1.442695
      %v1155 = vpow.pop %v1154
      %v1156 = vmul.f32 %v1132, 1.442695
      %v1157 = vpow.pop %v1156
      %v1158 = vmul.f32 %v1133, 1.442695
      %v1159 = vpow.pop %v1158
      %v1160 = vmul.f32 %v1134, 1.442695
      %v1161 = vpow.pop %v1160
      %v1162 = vmul.f32 %v1135, 1.442695
      %v1163 = vpow.pop %v1162
      %v1164 = vmul.f32 %v1136, 1.442695
      %v1165 = vpow.pop %v1164
      %v1166 = vmul.f32 %v1137, 1.442695
      %v1167 = vpow.pop %v1166
      %v1168 = vmul.f32 %v1138, 1.442695
      %v1169 = vpow.pop %v1168
      %v1170 = vmul.f32 %v1139, 1.442695
      %v1171 = vpow.pop %v1170
      %v1172 = vsel %vm1075, %v1141, 0.0
      %1173 = vadd.xlane.f32.xlu0 %v1172
      %v1174 = vpop.xlane.xlu0 %1173
      %v1175 = vsel %vm1075, %v1143, 0.0
      %1176 = vadd.xlane.f32.xlu0 %v1175
      %v1177 = vpop.xlane.xlu0 %1176
      %v1178 = vsel %vm1075, %v1145, 0.0
      %1179 = vadd.xlane.f32.xlu0 %v1178
      %v1180 = vpop.xlane.xlu0 %1179
      %v1181 = vsel %vm1075, %v1147, 0.0
      %1182 = vadd.xlane.f32.xlu0 %v1181
      %v1183 = vpop.xlane.xlu0 %1182
      %v1184 = vsel %vm1075, %v1149, 0.0
      %1185 = vadd.xlane.f32.xlu0 %v1184
      %v1186 = vpop.xlane.xlu0 %1185
      %v1187 = vsel %vm1075, %v1151, 0.0
      %1188 = vadd.xlane.f32.xlu0 %v1187
      %v1189 = vpop.xlane.xlu0 %1188
      %v1190 = vsel %vm1075, %v1153, 0.0
      %1191 = vadd.xlane.f32.xlu0 %v1190
      %v1192 = vpop.xlane.xlu0 %1191
      %v1193 = vsel %vm1075, %v1155, 0.0
      %1194 = vadd.xlane.f32.xlu0 %v1193
      %v1195 = vpop.xlane.xlu0 %1194
      %v1196 = vsel %vm1075, %v1157, 0.0
      %1197 = vadd.xlane.f32.xlu0 %v1196
      %v1198 = vpop.xlane.xlu0 %1197
      %v1199 = vsel %vm1075, %v1159, 0.0
      %1200 = vadd.xlane.f32.xlu0 %v1199
      %v1201 = vpop.xlane.xlu0 %1200
      %v1202 = vsel %vm1075, %v1161, 0.0
      %1203 = vadd.xlane.f32.xlu0 %v1202
      %v1204 = vpop.xlane.xlu0 %1203
      %v1205 = vsel %vm1075, %v1163, 0.0
      %1206 = vadd.xlane.f32.xlu0 %v1205
      %v1207 = vpop.xlane.xlu0 %1206
      %v1208 = vsel %vm1075, %v1165, 0.0
      %1209 = vadd.xlane.f32.xlu0 %v1208
      %v1210 = vpop.xlane.xlu0 %1209
      %v1211 = vsel %vm1075, %v1167, 0.0
      %1212 = vadd.xlane.f32.xlu0 %v1211
      %v1213 = vpop.xlane.xlu0 %1212
      %v1214 = vsel %vm1075, %v1169, 0.0
      %1215 = vadd.xlane.f32.xlu0 %v1214
      %v1216 = vpop.xlane.xlu0 %1215
      %v1217 = vsel %vm1075, %v1171, 0.0
      %1218 = vadd.xlane.f32.xlu0 %v1217
      %v1219 = vpop.xlane.xlu0 %1218
      %v1220 = vrcp.pop %v1174
      %v1221 = vrcp.pop %v1177
      %v1222 = vrcp.pop %v1180
      %v1223 = vrcp.pop %v1183
      %v1224 = vrcp.pop %v1186
      %v1225 = vrcp.pop %v1189
      %v1226 = vrcp.pop %v1192
      %v1227 = vrcp.pop %v1195
      %v1228 = vrcp.pop %v1198
      %v1229 = vrcp.pop %v1201
      %v1230 = vrcp.pop %v1204
      %v1231 = vrcp.pop %v1207
      %v1232 = vrcp.pop %v1210
      %v1233 = vrcp.pop %v1213
      %v1234 = vrcp.pop %v1216
      %v1235 = vrcp.pop %v1219
      %v1236 = vmul.f32 %v1141, %v1220
      %v1237 = vmul.f32 %v1143, %v1221
      %v1238 = vmul.f32 %v1145, %v1222
      %v1239 = vmul.f32 %v1147, %v1223
      %v1240 = vmul.f32 %v1149, %v1224
      %v1241 = vmul.f32 %v1151, %v1225
      %v1242 = vmul.f32 %v1153, %v1226
      %v1243 = vmul.f32 %v1155, %v1227
      %v1244 = vmul.f32 %v1157, %v1228
      %v1245 = vmul.f32 %v1159, %v1229
      %v1246 = vmul.f32 %v1161, %v1230
      %v1247 = vmul.f32 %v1163, %v1231
      %v1248 = vmul.f32 %v1165, %v1232
      %v1249 = vmul.f32 %v1167, %v1233
      %v1250 = vmul.f32 %v1169, %v1234
      %v1251 = vmul.f32 %v1171, %v1235
      %v1260 = vrot.slane %v1238, 7
      %vm1261 = vcmask 1041409
      %v1262 = vsel %vm1261, %v1260, %v1236
      %v1263 = vrot.slane %v1240, 6
      %vm1264 = vcmask 1042434
      %v1265 = vsel %vm1264, %v1263, %v1262
      %v1266 = vrot.slane %v1242, 5
      %vm1267 = vcmask 1043459
      %v1268 = vsel %vm1267, %v1266, %v1265
      %v1269 = vrot.slane %v1244, 4
      %vm1270 = vcmask 1044484
      %v1271 = vsel %vm1270, %v1269, %v1268
      %v1272 = vrot.slane %v1246, 3
      %vm1273 = vcmask 1045509
      %v1274 = vsel %vm1273, %v1272, %v1271
      %v1275 = vrot.slane %v1248, 2
      %vm1276 = vcmask 1046534
      %v1277 = vsel %vm1276, %v1275, %v1274
      %v1278 = vrot.slane %v1250, 1
      %vm1279 = vcmask 1047559
      %v1280 = vsel %vm1279, %v1278, %v1277
      %1282 = vst.msk [vmem:[%s148] sm:$0xff] %vm1075, %v1280
      %v1283 = vrot.slane %v1236, 1
      %v1284 = vsel %vm1261, %v1238, %v1283
      %v1285 = vrot.slane %v1240, 7
      %v1286 = vsel %vm1264, %v1285, %v1284
      %v1287 = vrot.slane %v1242, 6
      %v1288 = vsel %vm1267, %v1287, %v1286
      %v1289 = vrot.slane %v1244, 5
      %v1290 = vsel %vm1270, %v1289, %v1288
      %v1291 = vrot.slane %v1246, 4
      %v1292 = vsel %vm1273, %v1291, %v1290
      %v1293 = vrot.slane %v1248, 3
      %v1294 = vsel %vm1276, %v1293, %v1292
      %v1295 = vrot.slane %v1250, 2
      %v1296 = vsel %vm1279, %v1295, %v1294
      %1297 = vrot.lane.b32.xlu0 %v1296, 16
      %v1298 = vpop.permute.xlu0 %1297
      %vm1300 = vcmask 261248
      %1301 = vst.msk [vmem:[%s148] sm:$0xff] %vm1300, %v1298
      %v1302 = vrot.slane %v1236, 2
      %v1303 = vrot.slane %v1238, 1
      %v1304 = vsel %vm1261, %v1303, %v1302
      %v1305 = vsel %vm1264, %v1240, %v1304
      %v1306 = vrot.slane %v1242, 7
      %v1307 = vsel %vm1267, %v1306, %v1305
      %v1308 = vrot.slane %v1244, 6
      %v1309 = vsel %vm1270, %v1308, %v1307
      %v1310 = vrot.slane %v1246, 5
      %v1311 = vsel %vm1273, %v1310, %v1309
      %v1312 = vrot.slane %v1248, 4
      %v1313 = vsel %vm1276, %v1312, %v1311
      %v1314 = vrot.slane %v1250, 3
      %v1315 = vsel %vm1279, %v1314, %v1313
      %1316 = vrot.lane.b32.xlu0 %v1315, 32
      %v1317 = vpop.permute.xlu0 %1316
      %vm1319 = vcmask 392448
      %1320 = vst.msk [vmem:[%s148] sm:$0xff] %vm1319, %v1317
      %v1321 = vrot.slane %v1236, 3
      %v1322 = vrot.slane %v1238, 2
      %v1323 = vsel %vm1261, %v1322, %v1321
      %v1324 = vrot.slane %v1240, 1
      %v1325 = vsel %vm1264, %v1324, %v1323
      %v1326 = vsel %vm1267, %v1242, %v1325
      %v1327 = vrot.slane %v1244, 7
      %v1328 = vsel %vm1270, %v1327, %v1326
      %v1329 = vrot.slane %v1246, 6
      %v1330 = vsel %vm1273, %v1329, %v1328
      %v1331 = vrot.slane %v1248, 5
      %v1332 = vsel %vm1276, %v1331, %v1330
      %v1333 = vrot.slane %v1250, 4
      %v1334 = vsel %vm1279, %v1333, %v1332
      %1335 = vrot.lane.b32.xlu0 %v1334, 48
      %v1336 = vpop.permute.xlu0 %1335
      %vm1338 = vcmask 523648
      %1339 = vst.msk [vmem:[%s148] sm:$0xff] %vm1338, %v1336
      %v1340 = vrot.slane %v1236, 4
      %v1341 = vrot.slane %v1238, 3
      %v1342 = vsel %vm1261, %v1341, %v1340
      %v1343 = vrot.slane %v1240, 2
      %v1344 = vsel %vm1264, %v1343, %v1342
      %v1345 = vrot.slane %v1242, 1
      %v1346 = vsel %vm1267, %v1345, %v1344
      %v1347 = vsel %vm1270, %v1244, %v1346
      %v1348 = vrot.slane %v1246, 7
      %v1349 = vsel %vm1273, %v1348, %v1347
      %v1350 = vrot.slane %v1248, 6
      %v1351 = vsel %vm1276, %v1350, %v1349
      %v1352 = vrot.slane %v1250, 5
      %v1353 = vsel %vm1279, %v1352, %v1351
      %1354 = vrot.lane.b32.xlu0 %v1353, 64
      %v1355 = vpop.permute.xlu0 %1354
      %vm1357 = vcmask 654848
      %1358 = vst.msk [vmem:[%s148] sm:$0xff] %vm1357, %v1355
      %v1359 = vrot.slane %v1236, 5
      %v1360 = vrot.slane %v1238, 4
      %v1361 = vsel %vm1261, %v1360, %v1359
      %v1362 = vrot.slane %v1240, 3
      %v1363 = vsel %vm1264, %v1362, %v1361
      %v1364 = vrot.slane %v1242, 2
      %v1365 = vsel %vm1267, %v1364, %v1363
      %v1366 = vrot.slane %v1244, 1
      %v1367 = vsel %vm1270, %v1366, %v1365
      %v1368 = vsel %vm1273, %v1246, %v1367
      %v1369 = vrot.slane %v1248, 7
      %v1370 = vsel %vm1276, %v1369, %v1368
      %v1371 = vrot.slane %v1250, 6
      %v1372 = vsel %vm1279, %v1371, %v1370
      %1373 = vrot.lane.b32.xlu0 %v1372, 80
      %v1374 = vpop.permute.xlu0 %1373
      %vm1376 = vcmask 786048
      %1377 = vst.msk [vmem:[%s148] sm:$0xff] %vm1376, %v1374
      %v1378 = vrot.slane %v1236, 6
      %v1379 = vrot.slane %v1238, 5
      %v1380 = vsel %vm1261, %v1379, %v1378
      %v1381 = vrot.slane %v1240, 4
      %v1382 = vsel %vm1264, %v1381, %v1380
      %v1383 = vrot.slane %v1242, 3
      %v1384 = vsel %vm1267, %v1383, %v1382
      %v1385 = vrot.slane %v1244, 2
      %v1386 = vsel %vm1270, %v1385, %v1384
      %v1387 = vrot.slane %v1246, 1
      %v1388 = vsel %vm1273, %v1387, %v1386
      %v1389 = vsel %vm1276, %v1248, %v1388
      %v1390 = vrot.slane %v1250, 7
      %v1391 = vsel %vm1279, %v1390, %v1389
      %1392 = vrot.lane.b32.xlu0 %v1391, 96
      %v1393 = vpop.permute.xlu0 %1392
      %vm1395 = vcmask 917248
      %1396 = vst.msk [vmem:[%s148] sm:$0xff] %vm1395, %v1393
      %v1397 = vrot.slane %v1236, 7
      %v1398 = vrot.slane %v1238, 6
      %v1399 = vsel %vm1261, %v1398, %v1397
      %v1400 = vrot.slane %v1240, 5
      %v1401 = vsel %vm1264, %v1400, %v1399
      %v1402 = vrot.slane %v1242, 4
      %v1403 = vsel %vm1267, %v1402, %v1401
      %v1404 = vrot.slane %v1244, 3
      %v1405 = vsel %vm1270, %v1404, %v1403
      %v1406 = vrot.slane %v1246, 2
      %v1407 = vsel %vm1273, %v1406, %v1405
      %v1408 = vrot.slane %v1248, 1
      %v1409 = vsel %vm1276, %v1408, %v1407
      %v1410 = vsel %vm1279, %v1250, %v1409
      %1411 = vrot.lane.b32.xlu0 %v1410, 112
      %v1412 = vpop.permute.xlu0 %1411
      %vm1414 = vcmask 1048448
      %1415 = vst.msk [vmem:[%s148] sm:$0xff] %vm1414, %v1412
      %v1424 = vrot.slane %v1239, 7
      %v1425 = vsel %vm1261, %v1424, %v1237
      %v1426 = vrot.slane %v1241, 6
      %v1427 = vsel %vm1264, %v1426, %v1425
      %v1428 = vrot.slane %v1243, 5
      %v1429 = vsel %vm1267, %v1428, %v1427
      %v1430 = vrot.slane %v1245, 4
      %v1431 = vsel %vm1270, %v1430, %v1429
      %v1432 = vrot.slane %v1247, 3
      %v1433 = vsel %vm1273, %v1432, %v1431
      %v1434 = vrot.slane %v1249, 2
      %v1435 = vsel %vm1276, %v1434, %v1433
      %v1436 = vrot.slane %v1251, 1
      %v1437 = vsel %vm1279, %v1436, %v1435
      %1439 = vst.msk [vmem:[%s148 + $0x8] sm:$0xff] %vm1075, %v1437
      %v1440 = vrot.slane %v1237, 1
      %v1441 = vsel %vm1261, %v1239, %v1440
      %v1442 = vrot.slane %v1241, 7
      %v1443 = vsel %vm1264, %v1442, %v1441
      %v1444 = vrot.slane %v1243, 6
      %v1445 = vsel %vm1267, %v1444, %v1443
      %v1446 = vrot.slane %v1245, 5
      %v1447 = vsel %vm1270, %v1446, %v1445
      %v1448 = vrot.slane %v1247, 4
      %v1449 = vsel %vm1273, %v1448, %v1447
      %v1450 = vrot.slane %v1249, 3
      %v1451 = vsel %vm1276, %v1450, %v1449
      %v1452 = vrot.slane %v1251, 2
      %v1453 = vsel %vm1279, %v1452, %v1451
      %1454 = vrot.lane.b32.xlu0 %v1453, 16
      %v1455 = vpop.permute.xlu0 %1454
      %1457 = vst.msk [vmem:[%s148 + $0x8] sm:$0xff] %vm1300, %v1455
      %v1458 = vrot.slane %v1237, 2
      %v1459 = vrot.slane %v1239, 1
      %v1460 = vsel %vm1261, %v1459, %v1458
      %v1461 = vsel %vm1264, %v1241, %v1460
      %v1462 = vrot.slane %v1243, 7
      %v1463 = vsel %vm1267, %v1462, %v1461
      %v1464 = vrot.slane %v1245, 6
      %v1465 = vsel %vm1270, %v1464, %v1463
      %v1466 = vrot.slane %v1247, 5
      %v1467 = vsel %vm1273, %v1466, %v1465
      %v1468 = vrot.slane %v1249, 4
      %v1469 = vsel %vm1276, %v1468, %v1467
      %v1470 = vrot.slane %v1251, 3
      %v1471 = vsel %vm1279, %v1470, %v1469
      %1472 = vrot.lane.b32.xlu0 %v1471, 32
      %v1473 = vpop.permute.xlu0 %1472
      %1475 = vst.msk [vmem:[%s148 + $0x8] sm:$0xff] %vm1319, %v1473
      %v1476 = vrot.slane %v1237, 3
      %v1477 = vrot.slane %v1239, 2
      %v1478 = vsel %vm1261, %v1477, %v1476
      %v1479 = vrot.slane %v1241, 1
      %v1480 = vsel %vm1264, %v1479, %v1478
      %v1481 = vsel %vm1267, %v1243, %v1480
      %v1482 = vrot.slane %v1245, 7
      %v1483 = vsel %vm1270, %v1482, %v1481
      %v1484 = vrot.slane %v1247, 6
      %v1485 = vsel %vm1273, %v1484, %v1483
      %v1486 = vrot.slane %v1249, 5
      %v1487 = vsel %vm1276, %v1486, %v1485
      %v1488 = vrot.slane %v1251, 4
      %v1489 = vsel %vm1279, %v1488, %v1487
      %1490 = vrot.lane.b32.xlu0 %v1489, 48
      %v1491 = vpop.permute.xlu0 %1490
      %1493 = vst.msk [vmem:[%s148 + $0x8] sm:$0xff] %vm1338, %v1491
      %v1494 = vrot.slane %v1237, 4
      %v1495 = vrot.slane %v1239, 3
      %v1496 = vsel %vm1261, %v1495, %v1494
      %v1497 = vrot.slane %v1241, 2
      %v1498 = vsel %vm1264, %v1497, %v1496
      %v1499 = vrot.slane %v1243, 1
      %v1500 = vsel %vm1267, %v1499, %v1498
      %v1501 = vsel %vm1270, %v1245, %v1500
      %v1502 = vrot.slane %v1247, 7
      %v1503 = vsel %vm1273, %v1502, %v1501
      %v1504 = vrot.slane %v1249, 6
      %v1505 = vsel %vm1276, %v1504, %v1503
      %v1506 = vrot.slane %v1251, 5
      %v1507 = vsel %vm1279, %v1506, %v1505
      %1508 = vrot.lane.b32.xlu0 %v1507, 64
      %v1509 = vpop.permute.xlu0 %1508
      %1511 = vst.msk [vmem:[%s148 + $0x8] sm:$0xff] %vm1357, %v1509
      %v1512 = vrot.slane %v1237, 5
      %v1513 = vrot.slane %v1239, 4
      %v1514 = vsel %vm1261, %v1513, %v1512
      %v1515 = vrot.slane %v1241, 3
      %v1516 = vsel %vm1264, %v1515, %v1514
      %v1517 = vrot.slane %v1243, 2
      %v1518 = vsel %vm1267, %v1517, %v1516
      %v1519 = vrot.slane %v1245, 1
      %v1520 = vsel %vm1270, %v1519, %v1518
      %v1521 = vsel %vm1273, %v1247, %v1520
      %v1522 = vrot.slane %v1249, 7
      %v1523 = vsel %vm1276, %v1522, %v1521
      %v1524 = vrot.slane %v1251, 6
      %v1525 = vsel %vm1279, %v1524, %v1523
      %1526 = vrot.lane.b32.xlu0 %v1525, 80
      %v1527 = vpop.permute.xlu0 %1526
      %1529 = vst.msk [vmem:[%s148 + $0x8] sm:$0xff] %vm1376, %v1527
      %v1530 = vrot.slane %v1237, 6
      %v1531 = vrot.slane %v1239, 5
      %v1532 = vsel %vm1261, %v1531, %v1530
      %v1533 = vrot.slane %v1241, 4
      %v1534 = vsel %vm1264, %v1533, %v1532
      %v1535 = vrot.slane %v1243, 3
      %v1536 = vsel %vm1267, %v1535, %v1534
      %v1537 = vrot.slane %v1245, 2
      %v1538 = vsel %vm1270, %v1537, %v1536
      %v1539 = vrot.slane %v1247, 1
      %v1540 = vsel %vm1273, %v1539, %v1538
      %v1541 = vsel %vm1276, %v1249, %v1540
      %v1542 = vrot.slane %v1251, 7
      %v1543 = vsel %vm1279, %v1542, %v1541
      %1544 = vrot.lane.b32.xlu0 %v1543, 96
      %v1545 = vpop.permute.xlu0 %1544
      %1547 = vst.msk [vmem:[%s148 + $0x8] sm:$0xff] %vm1395, %v1545
      %v1548 = vrot.slane %v1237, 7
      %v1549 = vrot.slane %v1239, 6
      %v1550 = vsel %vm1261, %v1549, %v1548
      %v1551 = vrot.slane %v1241, 5
      %v1552 = vsel %vm1264, %v1551, %v1550
      %v1553 = vrot.slane %v1243, 4
      %v1554 = vsel %vm1267, %v1553, %v1552
      %v1555 = vrot.slane %v1245, 3
      %v1556 = vsel %vm1270, %v1555, %v1554
      %v1557 = vrot.slane %v1247, 2
      %v1558 = vsel %vm1273, %v1557, %v1556
      %v1559 = vrot.slane %v1249, 1
      %v1560 = vsel %vm1276, %v1559, %v1558
      %v1561 = vsel %vm1279, %v1251, %v1560
      %1562 = vrot.lane.b32.xlu0 %v1561, 112
      %v1563 = vpop.permute.xlu0 %1562
      %1565 = vst.msk [vmem:[%s148 + $0x8] sm:$0xff] %vm1414, %v1563
      %p1566 = scmp.lt.s32.totalorder %s13, 1
      %s1567 = scalar_select %p1566, %s13, 1
      %s1568 = smul.addr %s1567, 2
      %s1569 = smul.addr %s1568, 8
      %s1570 = scalar_lea.vmem %s2, %s1569
      // Predicated region
      $region29: #{compute_g_spa.1} parent=27 // pred_check
        %p1571 = pneg %p78
      $region30: #{compute_g_spa.1} parent=27 // pred_check_branch
        %1573 = sbr.rel (%p1571) target = $region32
      $region31: #{compute_g_spa.1} parent=27 // pred_region
        _
      $region32: #{compute_g_spa.1} parent=27 // pred_fallthru
        _
    $region28: #{compute_g_spa.1} parent=5 // pred_fallthru
      _
    %p1574 = scmp.le.s32.totalorder 2, %s8
    // Predicated region
    $region33: #{compute_g_spa.1} parent=5 // pred_check
      %p1575 = pneg %p1574
    $region34: #{compute_g_spa.1} parent=5 // pred_check_branch
      %1577 = sbr.rel (%p1575) target = $region36
    $region35: #{compute_g_spa.1} parent=5 // pred_region
      %s1578 = ssub.s32 %s8, 2
      // Predicated region
      $region37: #{compute_g_spa.1} parent=35 // pred_check
        %p1579 = pneg %p84
      $region38: #{compute_g_spa.1} parent=35 // pred_check_branch
        %1581 = sbr.rel (%p1579) target = $region40
      $region39: #{compute_g_spa.1} parent=35 // pred_region
        %p1582 = scmp.lt.s32.totalorder %s14, 1
        %s1583 = scalar_select %p1582, %s14, 1
        %s1584 = smul.addr %s1583, 2
        %s1585 = smul.addr %s1584, 8
        %s1586 = scalar_lea.vmem %s2, %s1585
      $region40: #{compute_g_spa.1} parent=35 // pred_fallthru
        _
    $region36: #{compute_g_spa.1} parent=5 // pred_fallthru
      _
  $region6: #{compute_g_spa.1} parent=0 // loop_footer
    %s12 = sadd.s32 1, %s8
  $region7: #{compute_g_spa.1} parent=0 // loop_footer_branch
    %7 = sbr.rel target = $region3
  $region8: #{compute_g_spa.1} parent=0 // loop_exit
    _

</llo_original>
